<compile_context>
chip_gen: v7x
topology: tpu7x:2x2x1
jax: 0.10.0
libtpu: 0.0.40
codegen_flags: <defaults>
</compile_context>

<pallas_src>
import math
import functools

import jax
import jax.numpy as jnp
from jax import lax
from jax.experimental import pallas as pl
from jax.experimental.pallas import tpu as pltpu

MASK_MIN = float(jnp.finfo(jnp.float32).min)   # matches torch.finfo(dtype).min additive mask


# ----------------------------------------------------------------------------
# Kernel A: fused q/k/v_queries projection + inner_func value construction
# ----------------------------------------------------------------------------
def qkv_kernel(x_ref, wqkv_ref, bqkv_ref, vkeys_ref, vembed_ref,
               q_ref, k_ref, v_ref, *, d_model, n_inner_value_heads,
               n_inner_values, n_value_per_head):
    x = x_ref[0]                                     # (TS, D) bf16
    ts = x.shape[0]
    D = d_model
    n_ivh = n_inner_value_heads
    n_iv = n_inner_values

    # One wide lane-dense MXU matmul for q_proj | k_proj | v_queries.
    # The 1/sqrt(head_dim) attention scale is pre-folded into the wq columns on the host.
    qkv = jnp.dot(x, wqkv_ref[...], preferred_element_type=jnp.float32) + bqkv_ref[...]
    q_ref[0] = qkv[:, :D].astype(q_ref.dtype)
    k_ref[0] = qkv[:, D:2 * D].astype(k_ref.dtype)
    vq = qkv[:, 2 * D:]                              # (TS, n_ivh * d_ret) f32

    # inner_func similarity against block-diagonal v_keys -> packed (TS, n_ivh*n_iv) tile.
    sim_all = jnp.dot(vq.astype(jnp.bfloat16), vkeys_ref[...],
                      preferred_element_type=jnp.float32)

    # Iterative top-k with lowest-index tie-break (matches lax.top_k / torch.topk).
    # All inner-value heads are stacked along sublanes so the loop runs only
    # n_value_per_head times (n_ivh x fewer cross-lane reductions / selects).
    remaining = jnp.concatenate(
        [sim_all[:, h * n_iv:(h + 1) * n_iv] for h in range(n_ivh)], axis=0)  # (n_ivh*TS, n_iv)
    iota = lax.broadcasted_iota(jnp.int32, (n_ivh * ts, n_iv), 1)
    counts_st = jnp.zeros((n_ivh * ts, n_iv), jnp.float32)
    for _ in range(n_value_per_head):
        mx = jnp.max(remaining, axis=-1, keepdims=True)
        cand = jnp.where(remaining == mx, iota, n_iv)
        first = jnp.min(cand, axis=-1, keepdims=True)
        onehot = (iota == first).astype(jnp.float32)
        counts_st = counts_st + onehot
        remaining = jnp.where(onehot > 0, MASK_MIN, remaining)

    counts = counts_st[:ts]
    for h in range(1, n_ivh):
        counts = counts + counts_st[h * ts:(h + 1) * ts]          # (TS, n_iv)

    # counts @ v_embed == sum over heads/top-k of selected embeddings.
    emb = jnp.dot(counts.astype(jnp.bfloat16), vembed_ref[...],
                  preferred_element_type=jnp.float32)              # (TS, D)
    v_ref[0] = (x.astype(jnp.float32) * emb).astype(v_ref.dtype)   # value states


# ----------------------------------------------------------------------------
# Kernel B: flash-style causal attention + output projection
# ----------------------------------------------------------------------------
def attn_kernel(q_ref, k_ref, v_ref, wo_ref, bo_ref, o_ref,
                acc_ref, m_ref, l_ref, *, n_heads, head_dim):
    qi = pl.program_id(1)
    ki = pl.program_id(2)
    tq = q_ref.shape[1]
    tk = k_ref.shape[1]

    @pl.when(ki == 0)
    def _init():
        m_ref[...] = jnp.full_like(m_ref, -jnp.inf)
        l_ref[...] = jnp.zeros_like(l_ref)
        acc_ref[...] = jnp.zeros_like(acc_ref)

    def _process(masked):
        q = q_ref[0]                                               # (TQ, D) bf16
        k = k_ref[0]                                               # (TK, D) bf16
        v = v_ref[0]                                               # (TK, D) bf16
        if masked:
            # Diagonal tile only; TQ == TK so global offsets cancel -> local triangle.
            r = lax.broadcasted_iota(jnp.int32, (tq, tk), 0)
            c = lax.broadcasted_iota(jnp.int32, (tq, tk), 1)
            mask_add = jnp.where(c > r, MASK_MIN, 0.0).astype(jnp.float32)

        alpha_parts = []
        pv_parts = []
        for h in range(n_heads):
            sl = slice(h * head_dim, (h + 1) * head_dim)
            # "nt"-form dot_general: contract head_dim directly, no k.T materialized.
            s = lax.dot_general(q[:, sl], k[:, sl], (((1,), (1,)), ((), ())),
                                preferred_element_type=jnp.float32)   # (TQ, TK)
            if masked:
                s = s + mask_add
            m_prev = m_ref[h]                                      # (TQ, 1)
            m_new = jnp.maximum(m_prev, jnp.max(s, axis=-1, keepdims=True))
            alpha = jnp.exp(m_prev - m_new)
            p = jnp.exp(s - m_new)
            l_ref[h] = alpha * l_ref[h] + jnp.sum(p, axis=-1, keepdims=True)
            m_ref[h] = m_new
            pv = jnp.dot(p.astype(v.dtype), v[:, sl],
                         preferred_element_type=jnp.float32)       # (TQ, head_dim)
            alpha_parts.append(jnp.broadcast_to(alpha, (tq, head_dim)))
            pv_parts.append(pv)

        # Single full-width accumulator update per kv step (no per-head partial stores).
        alpha_full = jnp.concatenate(alpha_parts, axis=-1)          # (TQ, D)
        pv_full = jnp.concatenate(pv_parts, axis=-1)                # (TQ, D)
        acc_ref[...] = alpha_full * acc_ref[...] + pv_full

    # Interior kv tiles (strictly below the diagonal): no mask construction at all.
    @pl.when(ki < qi)
    def _interior():
        _process(masked=False)

    # Diagonal tile: local upper-triangle mask. Tiles with ki > qi are fully masked and
    # are neither fetched (index_map clamp) nor computed.
    @pl.when(ki == qi)
    def _diagonal():
        _process(masked=True)

    @pl.when(ki == pl.num_programs(2) - 1)
    def _finalize():
        # One whole-width normalization (exact reciprocal: runs once per q tile, free).
        inv_full = jnp.concatenate(
            [jnp.broadcast_to(pl.reciprocal(l_ref[h]), (tq, head_dim))
             for h in range(n_heads)], axis=-1)                     # (TQ, D)
        attn = (acc_ref[...] * inv_full).astype(wo_ref.dtype)       # (TQ, D) bf16
        o = jnp.dot(attn, wo_ref[...], preferred_element_type=jnp.float32) + bo_ref[...]
        o_ref[0] = o.astype(o_ref.dtype)


# ----------------------------------------------------------------------------
# Host-side parameter preparation (one-time transform)
# ----------------------------------------------------------------------------
def prepare_params(params, cfg):
    d_model = cfg["d_model"]
    head_dim = d_model // cfg["n_heads"]
    n_ivh = cfg["n_inner_value_heads"]
    d_ret = cfg["d_inner_values_retrieval"]
    n_iv = cfg["n_inner_values"]
    scale = 1.0 / math.sqrt(head_dim)

    # Fused [wq|wk|wvq] so Kernel A does one MXU pass; 1/sqrt(dh) folded into the q columns.
    wqkv = jnp.concatenate([params["wq"] * scale, params["wk"], params["wvq"]], axis=1)
    bqkv = jnp.concatenate([params["bq"] * scale, params["bk"], params["bvq"]], axis=1)

    # Block-diagonal v_keys so similarity for all inner-value heads is one matmul.
    vkeys_bd = jnp.zeros((n_ivh * d_ret, n_ivh * n_iv), jnp.float32)
    for h in range(n_ivh):
        vkeys_bd = vkeys_bd.at[h * d_ret:(h + 1) * d_ret,
                               h * n_iv:(h + 1) * n_iv].set(params["v_keys"][h])

    return {
        "wqkv": wqkv.astype(jnp.bfloat16),
        "bqkv": bqkv.astype(jnp.float32),
        "v_keys_bd": vkeys_bd.astype(jnp.bfloat16),
        "v_embed": params["v_embed"].astype(jnp.bfloat16),
        "wo": params["wo"].astype(jnp.bfloat16),
        "bo": params["bo"].astype(jnp.float32),
    }


def _weight_spec(shape, single_buffer):
    """Replicated (constant-index) weight operand; optionally single-buffered."""
    if single_buffer:
        return pl.BlockSpec(shape, lambda *_: (0,) * len(shape),
                            pipeline_mode=pl.Buffered(1))
    return pl.BlockSpec(shape, lambda *_: (0,) * len(shape))


def _device_tiling(seq_len):
    """Generation-aware default sequence tile and scoped-VMEM budget."""
    kind = ""
    try:
        kind = jax.devices()[0].device_kind.lower()
    except Exception:
        pass
    if "v7" in kind or "7x" in kind:
        ts_cap, vmem = 256, 48 * 1024 * 1024       # v7x: 64 MiB VMEM / TC
    elif "v6" in kind or "v5" in kind:
        ts_cap, vmem = 512, 64 * 1024 * 1024       # v5e / v6e: 128 MiB VMEM
    else:
        ts_cap, vmem = 256, 32 * 1024 * 1024       # conservative fallback
    ts = min(ts_cap, seq_len)
    if seq_len % ts:
        ts = next(d for d in range(ts, 0, -1) if seq_len % d == 0)
    return ts, vmem


# ----------------------------------------------------------------------------
# Forward wrapper
# ----------------------------------------------------------------------------
def _forward(hidden, prepped, cfg, *, block_seq, out_dtype, single_buffer_weights):
    B, S, D = hidden.shape
    H = cfg["n_heads"]
    head_dim = D // H
    n_ivh = cfg["n_inner_value_heads"]
    d_ret = cfg["d_inner_values_retrieval"]
    n_iv = cfg["n_inner_values"]
    n_vph = cfg["n_inner_value_per_head"]
    fused_w = 2 * D + n_ivh * d_ret

    ts_auto, vmem_limit = _device_tiling(S)
    ts = ts_auto if block_seq is None else min(block_seq, S)
    assert S % ts == 0, "sequence length must be divisible by the tile size"
    nt = S // ts
    x = hidden.astype(jnp.bfloat16)

    seq_spec = lambda: pl.BlockSpec((1, ts, D), lambda b, s: (b, s, 0))
    wspec = lambda shape: _weight_spec(shape, single_buffer_weights)

    # ---- Kernel A: fused q/k/v_queries projection + inner_func (values) ----
    qkv_fn = functools.partial(
        qkv_kernel, d_model=D, n_inner_value_heads=n_ivh,
        n_inner_values=n_iv, n_value_per_head=n_vph)
    q, k, v = pl.pallas_call(
        qkv_fn,
        out_shape=(jax.ShapeDtypeStruct((B, S, D), jnp.bfloat16),) * 3,
        grid=(B, nt),
        in_specs=[
            seq_spec(),                                   # hidden_states tile
            wspec((D, fused_w)), wspec((1, fused_w)),     # fused [wq|wk|wvq], bias
            wspec((n_ivh * d_ret, n_ivh * n_iv)),         # block-diagonal v_keys
            wspec((n_iv, D)),                             # v_embed table
        ],
        out_specs=(seq_spec(), seq_spec(), seq_spec()),
        compiler_params=pltpu.CompilerParams(
            dimension_semantics=("parallel", "parallel"),
            vmem_limit_bytes=vmem_limit),
    )(x, prepped["wqkv"], prepped["bqkv"], prepped["v_keys_bd"], prepped["v_embed"])

    # ---- Kernel B: flash-style causal attention + o_proj ----
    attn_fn = functools.partial(attn_kernel, n_heads=H, head_dim=head_dim)
    out = pl.pallas_call(
        attn_fn,
        out_shape=jax.ShapeDtypeStruct((B, S, D), out_dtype),
        grid=(B, nt, nt),
        in_specs=[
            pl.BlockSpec((1, ts, D), lambda b, qi, ki: (b, qi, 0)),              # q tile
            # Clamp the kv block index so masked upper-triangle K/V tiles are never DMA'd
            # (Pallas sees an unchanged block for ki > qi and skips the fetch).
            pl.BlockSpec((1, ts, D), lambda b, qi, ki: (b, jnp.minimum(ki, qi), 0)),
            pl.BlockSpec((1, ts, D), lambda b, qi, ki: (b, jnp.minimum(ki, qi), 0)),
            wspec((D, D)), wspec((1, D)),                                        # wo, bo
        ],
        out_specs=pl.BlockSpec((1, ts, D), lambda b, qi, ki: (b, qi, 0)),
        scratch_shapes=[
            pltpu.VMEM((ts, D), jnp.float32),       # acc (per-head columns, full width)
            pltpu.VMEM((H, ts, 1), jnp.float32),    # running max per head
            pltpu.VMEM((H, ts, 1), jnp.float32),    # running sum per head
        ],
        compiler_params=pltpu.CompilerParams(
            dimension_semantics=("parallel", "parallel", "arbitrary"),
            vmem_limit_bytes=vmem_limit),
    )(q, k, v, prepped["wo"], prepped["bo"])
    return out


def inner_func_attn_forward(hidden, prepped, cfg, *, block_seq=None,
                            out_dtype=jnp.bfloat16):
    try:
        return _forward(hidden, prepped, cfg, block_seq=block_seq,
                        out_dtype=out_dtype, single_buffer_weights=True)
    except Exception:
        # pipeline_mode=pl.Buffered(1) not supported by this jax/Mosaic version;
        # fall back to default double-buffered weight operands (correctness identical).
        return _forward(hidden, prepped, cfg, block_seq=block_seq,
                        out_dtype=out_dtype, single_buffer_weights=False)


# ----------------------------------------------------------------------------
# Pure-JAX reference (mirrors the PyTorch forward, attention_mask=None path).
# Consumes the same kernel-ready bf16 params so the inner_func top-k selection is
# made on (numerically) identical similarity values.
# ----------------------------------------------------------------------------
def reference_forward(hidden, prepped, cfg):
    B, S, D = hidden.shape
    H = cfg["n_heads"]
    dh = D // H
    n_ivh = cfg["n_inner_value_heads"]
    n_iv = cfg["n_inner_values"]
    n_vph = cfg["n_inner_value_per_head"]
    f32 = jnp.float32

    x = hidden.astype(jnp.bfloat16)
    qkv = jnp.einsum("bsd,de->bse", x, prepped["wqkv"],
                     preferred_element_type=f32) + prepped["bqkv"][0]
    q = qkv[..., :D]
    k = qkv[..., D:2 * D]
    vq = qkv[..., 2 * D:]

    sim_all = jnp.einsum("bse,ef->bsf", vq.astype(jnp.bfloat16), prepped["v_keys_bd"],
                         preferred_element_type=f32)
    sim = sim_all.reshape(B, S, n_ivh, n_iv).transpose(0, 2, 1, 3)   # (B, n_ivh, S, n_iv)
    _, idx = lax.top_k(sim, n_vph)
    counts = jnp.sum(jax.nn.one_hot(idx, n_iv, dtype=f32), axis=(1, 3))  # (B, S, n_iv)
    emb = jnp.einsum("bsn,nd->bsd", counts.astype(jnp.bfloat16), prepped["v_embed"],
                     preferred_element_type=f32)
    v = x.astype(f32) * emb

    qh = q.astype(jnp.bfloat16).reshape(B, S, H, dh).transpose(0, 2, 1, 3)
    kh = k.astype(jnp.bfloat16).reshape(B, S, H, dh).transpose(0, 2, 1, 3)
    vh = v.astype(jnp.bfloat16).reshape(B, S, H, dh).transpose(0, 2, 1, 3)
    # NOTE: 1/sqrt(dh) is already folded into the q columns of wqkv/bqkv.
    scores = jnp.einsum("bhqd,bhkd->bhqk", qh, kh, preferred_element_type=f32)
    rows = jnp.arange(S)[:, None]
    cols = jnp.arange(S)[None, :]
    scores = scores + jnp.where(cols > rows, MASK_MIN, 0.0)
    p = jax.nn.softmax(scores, axis=-1)
    attn = jnp.einsum("bhqk,bhkd->bhqd", p.astype(jnp.bfloat16), vh,
                      preferred_element_type=f32)
    attn = attn.transpose(0, 2, 1, 3).reshape(B, S, D)
    out = jnp.einsum("bsd,de->bse", attn.astype(jnp.bfloat16), prepped["wo"],
                     preferred_element_type=f32) + prepped["bo"][0]
    return out


if __name__ == "__main__":
    cfg = dict(
        d_model=32,
        n_heads=4,
        n_inner_values=16,
        n_inner_value_heads=2,
        n_inner_value_per_head=2,
        d_inner_values_retrieval=16,
        max_position_embeddings=64,
    )
    B, S, D = 2, 8, cfg["d_model"]
    n_ivh, d_ret, n_iv = (cfg["n_inner_value_heads"], cfg["d_inner_values_retrieval"],
                          cfg["n_inner_values"])

    key = jax.random.PRNGKey(0)
    ks = jax.random.split(key, 12)
    # Deterministic synthetic parameters. The PyTorch __init__ zero-inits v_keys which
    # makes top-k degenerate (all ties); random v_keys keep the selection well-defined.
    # dynamic_mask is unused on the attention_mask=None path and is omitted.
    params = {
        "wq": 0.05 * jax.random.normal(ks[0], (D, D), jnp.float32),
        "bq": 0.05 * jax.random.normal(ks[1], (1, D), jnp.float32),
        "wk": 0.05 * jax.random.normal(ks[2], (D, D), jnp.float32),
        "bk": 0.05 * jax.random.normal(ks[3], (1, D), jnp.float32),
        "wvq": 0.05 * jax.random.normal(ks[4], (D, n_ivh * d_ret), jnp.float32),
        "bvq": 0.05 * jax.random.normal(ks[5], (1, n_ivh * d_ret), jnp.float32),
        "v_keys": jax.random.normal(ks[6], (n_ivh, d_ret, n_iv), jnp.float32),
        "v_embed": 0.1 * jax.random.normal(ks[7], (n_iv, D), jnp.float32),
        "wo": 0.05 * jax.random.normal(ks[8], (D, D), jnp.float32),
        "bo": 0.05 * jax.random.normal(ks[9], (1, D), jnp.float32),
    }
    hidden = jax.random.normal(ks[10], (B, S, D), jnp.float32)

    prepped = prepare_params(params, cfg)
    out = inner_func_attn_forward(hidden, prepped, cfg)
    out = jax.block_until_ready(out)

    ref = reference_forward(hidden, prepped, cfg)
    assert out.shape == (B, S, D)
    assert jnp.allclose(out.astype(jnp.float32), ref, atol=3e-2, rtol=3e-2), \
        "Pallas kernel mismatch vs JAX reference"

    print("KERNEL_OK")
</pallas_src>

<mosaic_0001>
module attributes {stable_mosaic.version = 11 : i64} {
  func.func @qkv_kernel(%arg0: i32, %arg1: i32, %arg2: memref<1x8x32xbf16, #tpu.memory_space<vmem>>, %arg3: memref<32x96xbf16, #tpu.memory_space<vmem>>, %arg4: memref<1x96xf32, #tpu.memory_space<vmem>>, %arg5: memref<32x32xbf16, #tpu.memory_space<vmem>>, %arg6: memref<16x32xbf16, #tpu.memory_space<vmem>>, %arg7: memref<1x8x32xbf16, #tpu.memory_space<vmem>>, %arg8: memref<1x8x32xbf16, #tpu.memory_space<vmem>>, %arg9: memref<1x8x32xbf16, #tpu.memory_space<vmem>>) attributes {dimension_semantics = [#tpu.dimension_semantics<parallel>, #tpu.dimension_semantics<parallel>], iteration_bounds = array<i64: 2, 1>, scalar_prefetch = 0 : i64, scratch_operands = 0 : i64, tpu.core_type = #tpu.core_type<tc>, window_params = [{transform_indices = @transform_0, window_bounds = array<i64: 1, 8, 32>}, {pipeline_mode = #tpu.pipeline_mode<synchronous>, transform_indices = @transform_1, window_bounds = array<i64: 32, 96>}, {pipeline_mode = #tpu.pipeline_mode<synchronous>, transform_indices = @transform_2, window_bounds = array<i64: 1, 96>}, {pipeline_mode = #tpu.pipeline_mode<synchronous>, transform_indices = @transform_3, window_bounds = array<i64: 32, 32>}, {pipeline_mode = #tpu.pipeline_mode<synchronous>, transform_indices = @transform_4, window_bounds = array<i64: 16, 32>}, {transform_indices = @transform_5, window_bounds = array<i64: 1, 8, 32>}, {transform_indices = @transform_6, window_bounds = array<i64: 1, 8, 32>}, {transform_indices = @transform_7, window_bounds = array<i64: 1, 8, 32>}]} {
    %c0 = arith.constant 0 : index
    %c0_0 = arith.constant 0 : index
    %c0_1 = arith.constant 0 : index
    %0 = vector.load %arg2[%c0, %c0_0, %c0_1] : memref<1x8x32xbf16, #tpu.memory_space<vmem>>, vector<1x8x32xbf16>
    %1 = vector.shape_cast %0 : vector<1x8x32xbf16> to vector<8x32xbf16>
    %c0_2 = arith.constant 0 : index
    %c0_3 = arith.constant 0 : index
    %2 = vector.load %arg3[%c0_2, %c0_3] : memref<32x96xbf16, #tpu.memory_space<vmem>>, vector<32x96xbf16>
    %cst = arith.constant dense<0.000000e+00> : vector<8x96xf32>
    %3 = tpu.matmul %1, %2, %cst {dimension_numbers = #tpu.dot_dimension_numbers<[1], [0], [0], [1], [0, 0, 1, 1], [], []>} : vector<8x32xbf16>, vector<32x96xbf16>, vector<8x96xf32> -> vector<8x96xf32>
    %c0_4 = arith.constant 0 : index
    %c0_5 = arith.constant 0 : index
    %4 = vector.load %arg4[%c0_4, %c0_5] : memref<1x96xf32, #tpu.memory_space<vmem>>, vector<1x96xf32>
    %5 = vector.broadcast %4 : vector<1x96xf32> to vector<8x96xf32>
    %6 = arith.addf %3, %5 : vector<8x96xf32>
    %7 = vector.extract_strided_slice %6 {offsets = [0, 0], sizes = [8, 32], strides = [1, 1]} : vector<8x96xf32> to vector<8x32xf32>
    %8 = arith.truncf %7 : vector<8x32xf32> to vector<8x32xbf16>
    %c0_6 = arith.constant 0 : index
    %c0_7 = arith.constant 0 : index
    %c0_8 = arith.constant 0 : index
    %9 = vector.load %arg7[%c0_6, %c0_7, %c0_8] : memref<1x8x32xbf16, #tpu.memory_space<vmem>>, vector<1x8x32xbf16>
    %10 = vector.shape_cast %9 : vector<1x8x32xbf16> to vector<8x32xbf16>
    %11 = vector.shape_cast %8 : vector<8x32xbf16> to vector<1x8x32xbf16>
    tpu.vector_store %arg7[%c0_6, %c0_7, %c0_8], %11 {strides = array<i32>} : memref<1x8x32xbf16, #tpu.memory_space<vmem>>, vector<1x8x32xbf16>,
    %12 = vector.extract_strided_slice %6 {offsets = [0, 32], sizes = [8, 32], strides = [1, 1]} : vector<8x96xf32> to vector<8x32xf32>
    %13 = arith.truncf %12 : vector<8x32xf32> to vector<8x32xbf16>
    %c0_9 = arith.constant 0 : index
    %c0_10 = arith.constant 0 : index
    %c0_11 = arith.constant 0 : index
    %14 = vector.load %arg8[%c0_9, %c0_10, %c0_11] : memref<1x8x32xbf16, #tpu.memory_space<vmem>>, vector<1x8x32xbf16>
    %15 = vector.shape_cast %14 : vector<1x8x32xbf16> to vector<8x32xbf16>
    %16 = vector.shape_cast %13 : vector<8x32xbf16> to vector<1x8x32xbf16>
    tpu.vector_store %arg8[%c0_9, %c0_10, %c0_11], %16 {strides = array<i32>} : memref<1x8x32xbf16, #tpu.memory_space<vmem>>, vector<1x8x32xbf16>,
    %17 = vector.extract_strided_slice %6 {offsets = [0, 64], sizes = [8, 32], strides = [1, 1]} : vector<8x96xf32> to vector<8x32xf32>
    %18 = arith.truncf %17 : vector<8x32xf32> to vector<8x32xbf16>
    %c0_12 = arith.constant 0 : index
    %c0_13 = arith.constant 0 : index
    %19 = vector.load %arg5[%c0_12, %c0_13] : memref<32x32xbf16, #tpu.memory_space<vmem>>, vector<32x32xbf16>
    %cst_14 = arith.constant dense<0.000000e+00> : vector<8x32xf32>
    %20 = tpu.matmul %18, %19, %cst_14 {dimension_numbers = #tpu.dot_dimension_numbers<[1], [0], [0], [1], [0, 0, 1, 1], [], []>} : vector<8x32xbf16>, vector<32x32xbf16>, vector<8x32xf32> -> vector<8x32xf32>
    %21 = vector.extract_strided_slice %20 {offsets = [0, 0], sizes = [8, 16], strides = [1, 1]} : vector<8x32xf32> to vector<8x16xf32>
    %22 = vector.extract_strided_slice %20 {offsets = [0, 16], sizes = [8, 16], strides = [1, 1]} : vector<8x32xf32> to vector<8x16xf32>
    %23 = tpu.concatenate %21, %22 in 0 : vector<8x16xf32>, vector<8x16xf32> -> vector<16x16xf32>
    %24 = tpu.iota {dimensions = array<i32: 1>} : vector<16x16xi32>
    %cst_15 = arith.constant 0.000000e+00 : f32
    %25 = vector.broadcast %cst_15 : f32 to vector<16x16xf32>
    %cst_16 = arith.constant dense<0xFF800000> : vector<16xf32>
    %26 = vector.multi_reduction <maximumf>, %23, %cst_16 [1] : vector<16x16xf32> to vector<16xf32>
    %27 = vector.shape_cast %26 : vector<16xf32> to vector<16x1xf32>
    %28 = vector.broadcast %27 : vector<16x1xf32> to vector<16x16xf32>
    %29 = arith.cmpf oeq, %23, %28 : vector<16x16xf32>
    %c16_i32 = arith.constant 16 : i32
    %30 = vector.broadcast %c16_i32 : i32 to vector<16x16xi32>
    %31 = arith.select %29, %24, %30 : vector<16x16xi1>, vector<16x16xi32>
    %cst_17 = arith.constant dense<2147483647> : vector<16xi32>
    %32 = vector.multi_reduction <minsi>, %31, %cst_17 [1] : vector<16x16xi32> to vector<16xi32>
    %33 = vector.shape_cast %32 : vector<16xi32> to vector<16x1xi32>
    %34 = vector.broadcast %33 : vector<16x1xi32> to vector<16x16xi32>
    %35 = arith.cmpi eq, %24, %34 : vector<16x16xi32>
    %36 = arith.extui %35 : vector<16x16xi1> to vector<16x16xi32>
    %37 = arith.sitofp %36 : vector<16x16xi32> to vector<16x16xf32>
    %38 = arith.addf %25, %37 : vector<16x16xf32>
    %cst_18 = arith.constant 0.000000e+00 : f32
    %39 = vector.broadcast %cst_18 : f32 to vector<16x16xf32>
    %40 = arith.cmpf ogt, %37, %39 : vector<16x16xf32>
    %cst_19 = arith.constant -3.40282347E+38 : f32
    %41 = vector.broadcast %cst_19 : f32 to vector<16x16xf32>
    %42 = arith.select %40, %41, %23 : vector<16x16xi1>, vector<16x16xf32>
    %cst_20 = arith.constant dense<0xFF800000> : vector<16xf32>
    %43 = vector.multi_reduction <maximumf>, %42, %cst_20 [1] : vector<16x16xf32> to vector<16xf32>
    %44 = vector.shape_cast %43 : vector<16xf32> to vector<16x1xf32>
    %45 = vector.broadcast %44 : vector<16x1xf32> to vector<16x16xf32>
    %46 = arith.cmpf oeq, %42, %45 : vector<16x16xf32>
    %c16_i32_21 = arith.constant 16 : i32
    %47 = vector.broadcast %c16_i32_21 : i32 to vector<16x16xi32>
    %48 = arith.select %46, %24, %47 : vector<16x16xi1>, vector<16x16xi32>
    %cst_22 = arith.constant dense<2147483647> : vector<16xi32>
    %49 = vector.multi_reduction <minsi>, %48, %cst_22 [1] : vector<16x16xi32> to vector<16xi32>
    %50 = vector.shape_cast %49 : vector<16xi32> to vector<16x1xi32>
    %51 = vector.broadcast %50 : vector<16x1xi32> to vector<16x16xi32>
    %52 = arith.cmpi eq, %24, %51 : vector<16x16xi32>
    %53 = arith.extui %52 : vector<16x16xi1> to vector<16x16xi32>
    %54 = arith.sitofp %53 : vector<16x16xi32> to vector<16x16xf32>
    %55 = arith.addf %38, %54 : vector<16x16xf32>
    %56 = vector.extract_strided_slice %55 {offsets = [0, 0], sizes = [8, 16], strides = [1, 1]} : vector<16x16xf32> to vector<8x16xf32>
    %57 = vector.extract_strided_slice %55 {offsets = [8, 0], sizes = [8, 16], strides = [1, 1]} : vector<16x16xf32> to vector<8x16xf32>
    %58 = arith.addf %56, %57 : vector<8x16xf32>
    %59 = arith.truncf %58 : vector<8x16xf32> to vector<8x16xbf16>
    %c0_23 = arith.constant 0 : index
    %c0_24 = arith.constant 0 : index
    %60 = vector.load %arg6[%c0_23, %c0_24] : memref<16x32xbf16, #tpu.memory_space<vmem>>, vector<16x32xbf16>
    %cst_25 = arith.constant dense<0.000000e+00> : vector<8x32xf32>
    %61 = tpu.matmul %59, %60, %cst_25 {dimension_numbers = #tpu.dot_dimension_numbers<[1], [0], [0], [1], [0, 0, 1, 1], [], []>} : vector<8x16xbf16>, vector<16x32xbf16>, vector<8x32xf32> -> vector<8x32xf32>
    %62 = arith.extf %1 : vector<8x32xbf16> to vector<8x32xf32>
    %63 = arith.mulf %62, %61 : vector<8x32xf32>
    %64 = arith.truncf %63 : vector<8x32xf32> to vector<8x32xbf16>
    %c0_26 = arith.constant 0 : index
    %c0_27 = arith.constant 0 : index
    %c0_28 = arith.constant 0 : index
    %65 = vector.load %arg9[%c0_26, %c0_27, %c0_28] : memref<1x8x32xbf16, #tpu.memory_space<vmem>>, vector<1x8x32xbf16>
    %66 = vector.shape_cast %65 : vector<1x8x32xbf16> to vector<8x32xbf16>
    %67 = vector.shape_cast %64 : vector<8x32xbf16> to vector<1x8x32xbf16>
    tpu.vector_store %arg9[%c0_26, %c0_27, %c0_28], %67 {strides = array<i32>} : memref<1x8x32xbf16, #tpu.memory_space<vmem>>, vector<1x8x32xbf16>,
    return
  }
  func.func @transform_0(%arg0: i32, %arg1: i32) -> (i32, i32, i32) {
    %c0_i32 = arith.constant 0 : i32
    %c0_i32_0 = arith.constant 0 : i32
    return %arg0, %arg1, %c0_i32 : i32, i32, i32
  }
  func.func @transform_1(%arg0: i32, %arg1: i32) -> (i32, i32) {
    %c0_i32 = arith.constant 0 : i32
    %c0_i32_0 = arith.constant 0 : i32
    %c0_i32_1 = arith.constant 0 : i32
    return %c0_i32, %c0_i32_0 : i32, i32
  }
  func.func @transform_2(%arg0: i32, %arg1: i32) -> (i32, i32) {
    %c0_i32 = arith.constant 0 : i32
    %c0_i32_0 = arith.constant 0 : i32
    %c0_i32_1 = arith.constant 0 : i32
    return %c0_i32, %c0_i32_0 : i32, i32
  }
  func.func @transform_3(%arg0: i32, %arg1: i32) -> (i32, i32) {
    %c0_i32 = arith.constant 0 : i32
    %c0_i32_0 = arith.constant 0 : i32
    %c0_i32_1 = arith.constant 0 : i32
    return %c0_i32, %c0_i32_0 : i32, i32
  }
  func.func @transform_4(%arg0: i32, %arg1: i32) -> (i32, i32) {
    %c0_i32 = arith.constant 0 : i32
    %c0_i32_0 = arith.constant 0 : i32
    %c0_i32_1 = arith.constant 0 : i32
    return %c0_i32, %c0_i32_0 : i32, i32
  }
  func.func @transform_5(%arg0: i32, %arg1: i32) -> (i32, i32, i32) {
    %c0_i32 = arith.constant 0 : i32
    %c0_i32_0 = arith.constant 0 : i32
    return %arg0, %arg1, %c0_i32 : i32, i32, i32
  }
  func.func @transform_6(%arg0: i32, %arg1: i32) -> (i32, i32, i32) {
    %c0_i32 = arith.constant 0 : i32
    %c0_i32_0 = arith.constant 0 : i32
    return %arg0, %arg1, %c0_i32 : i32, i32, i32
  }
  func.func @transform_7(%arg0: i32, %arg1: i32) -> (i32, i32, i32) {
    %c0_i32 = arith.constant 0 : i32
    %c0_i32_0 = arith.constant 0 : i32
    return %arg0, %arg1, %c0_i32 : i32, i32, i32
  }
}

module attributes {stable_mosaic.version = 11 : i64} {
  func.func @qkv_kernel(%arg0: i32, %arg1: i32, %arg2: memref<1x8x32xbf16, #tpu.memory_space<vmem>>, %arg3: memref<32x96xbf16, #tpu.memory_space<vmem>>, %arg4: memref<1x96xf32, #tpu.memory_space<vmem>>, %arg5: memref<32x32xbf16, #tpu.memory_space<vmem>>, %arg6: memref<16x32xbf16, #tpu.memory_space<vmem>>, %arg7: memref<1x8x32xbf16, #tpu.memory_space<vmem>>, %arg8: memref<1x8x32xbf16, #tpu.memory_space<vmem>>, %arg9: memref<1x8x32xbf16, #tpu.memory_space<vmem>>) attributes {dimension_semantics = [#tpu.dimension_semantics<parallel>, #tpu.dimension_semantics<parallel>], iteration_bounds = array<i64: 2, 1>, scalar_prefetch = 0 : i64, scratch_operands = 0 : i64, tpu.core_type = #tpu.core_type<tc>, window_params = [{transform_indices = @transform_0, window_bounds = array<i64: 1, 8, 32>}, {pipeline_mode = #tpu.pipeline_mode<synchronous>, transform_indices = @transform_1, window_bounds = array<i64: 32, 96>}, {pipeline_mode = #tpu.pipeline_mode<synchronous>, transform_indices = @transform_2, window_bounds = array<i64: 1, 96>}, {pipeline_mode = #tpu.pipeline_mode<synchronous>, transform_indices = @transform_3, window_bounds = array<i64: 32, 32>}, {pipeline_mode = #tpu.pipeline_mode<synchronous>, transform_indices = @transform_4, window_bounds = array<i64: 16, 32>}, {transform_indices = @transform_5, window_bounds = array<i64: 1, 8, 32>}, {transform_indices = @transform_6, window_bounds = array<i64: 1, 8, 32>}, {transform_indices = @transform_7, window_bounds = array<i64: 1, 8, 32>}]} {
    %c0 = arith.constant 0 : index
    %c0_0 = arith.constant 0 : index
    %c0_1 = arith.constant 0 : index
    %0 = vector.load %arg2[%c0, %c0_0, %c0_1] : memref<1x8x32xbf16, #tpu.memory_space<vmem>>, vector<1x8x32xbf16>
    %1 = vector.shape_cast %0 : vector<1x8x32xbf16> to vector<8x32xbf16>
    %c0_2 = arith.constant 0 : index
    %c0_3 = arith.constant 0 : index
    %2 = vector.load %arg3[%c0_2, %c0_3] : memref<32x96xbf16, #tpu.memory_space<vmem>>, vector<32x96xbf16>
    %cst = arith.constant dense<0.000000e+00> : vector<8x96xf32>
    %3 = tpu.matmul %1, %2, %cst {dimension_numbers = #tpu.dot_dimension_numbers<[1], [0], [0], [1], [0, 0, 1, 1], [], []>} : vector<8x32xbf16>, vector<32x96xbf16>, vector<8x96xf32> -> vector<8x96xf32>
    %c0_4 = arith.constant 0 : index
    %c0_5 = arith.constant 0 : index
    %4 = vector.load %arg4[%c0_4, %c0_5] : memref<1x96xf32, #tpu.memory_space<vmem>>, vector<1x96xf32>
    %5 = vector.broadcast %4 : vector<1x96xf32> to vector<8x96xf32>
    %6 = arith.addf %3, %5 : vector<8x96xf32>
    %7 = vector.extract_strided_slice %6 {offsets = [0, 0], sizes = [8, 32], strides = [1, 1]} : vector<8x96xf32> to vector<8x32xf32>
    %8 = arith.truncf %7 : vector<8x32xf32> to vector<8x32xbf16>
    %c0_6 = arith.constant 0 : index
    %c0_7 = arith.constant 0 : index
    %c0_8 = arith.constant 0 : index
    %9 = vector.load %arg7[%c0_6, %c0_7, %c0_8] : memref<1x8x32xbf16, #tpu.memory_space<vmem>>, vector<1x8x32xbf16>
    %10 = vector.shape_cast %9 : vector<1x8x32xbf16> to vector<8x32xbf16>
    %11 = vector.shape_cast %8 : vector<8x32xbf16> to vector<1x8x32xbf16>
    tpu.vector_store %arg7[%c0_6, %c0_7, %c0_8], %11 {strides = array<i32>} : memref<1x8x32xbf16, #tpu.memory_space<vmem>>, vector<1x8x32xbf16>,
    %12 = vector.extract_strided_slice %6 {offsets = [0, 32], sizes = [8, 32], strides = [1, 1]} : vector<8x96xf32> to vector<8x32xf32>
    %13 = arith.truncf %12 : vector<8x32xf32> to vector<8x32xbf16>
    %c0_9 = arith.constant 0 : index
    %c0_10 = arith.constant 0 : index
    %c0_11 = arith.constant 0 : index
    %14 = vector.load %arg8[%c0_9, %c0_10, %c0_11] : memref<1x8x32xbf16, #tpu.memory_space<vmem>>, vector<1x8x32xbf16>
    %15 = vector.shape_cast %14 : vector<1x8x32xbf16> to vector<8x32xbf16>
    %16 = vector.shape_cast %13 : vector<8x32xbf16> to vector<1x8x32xbf16>
    tpu.vector_store %arg8[%c0_9, %c0_10, %c0_11], %16 {strides = array<i32>} : memref<1x8x32xbf16, #tpu.memory_space<vmem>>, vector<1x8x32xbf16>,
    %17 = vector.extract_strided_slice %6 {offsets = [0, 64], sizes = [8, 32], strides = [1, 1]} : vector<8x96xf32> to vector<8x32xf32>
    %18 = arith.truncf %17 : vector<8x32xf32> to vector<8x32xbf16>
    %c0_12 = arith.constant 0 : index
    %c0_13 = arith.constant 0 : index
    %19 = vector.load %arg5[%c0_12, %c0_13] : memref<32x32xbf16, #tpu.memory_space<vmem>>, vector<32x32xbf16>
    %cst_14 = arith.constant dense<0.000000e+00> : vector<8x32xf32>
    %20 = tpu.matmul %18, %19, %cst_14 {dimension_numbers = #tpu.dot_dimension_numbers<[1], [0], [0], [1], [0, 0, 1, 1], [], []>} : vector<8x32xbf16>, vector<32x32xbf16>, vector<8x32xf32> -> vector<8x32xf32>
    %21 = vector.extract_strided_slice %20 {offsets = [0, 0], sizes = [8, 16], strides = [1, 1]} : vector<8x32xf32> to vector<8x16xf32>
    %22 = vector.extract_strided_slice %20 {offsets = [0, 16], sizes = [8, 16], strides = [1, 1]} : vector<8x32xf32> to vector<8x16xf32>
    %23 = tpu.concatenate %21, %22 in 0 : vector<8x16xf32>, vector<8x16xf32> -> vector<16x16xf32>
    %24 = tpu.iota {dimensions = array<i32: 1>} : vector<16x16xi32>
    %cst_15 = arith.constant 0.000000e+00 : f32
    %25 = vector.broadcast %cst_15 : f32 to vector<16x16xf32>
    %cst_16 = arith.constant dense<0xFF800000> : vector<16xf32>
    %26 = vector.multi_reduction <maximumf>, %23, %cst_16 [1] : vector<16x16xf32> to vector<16xf32>
    %27 = vector.shape_cast %26 : vector<16xf32> to vector<16x1xf32>
    %28 = vector.broadcast %27 : vector<16x1xf32> to vector<16x16xf32>
    %29 = arith.cmpf oeq, %23, %28 : vector<16x16xf32>
    %c16_i32 = arith.constant 16 : i32
    %30 = vector.broadcast %c16_i32 : i32 to vector<16x16xi32>
    %31 = arith.select %29, %24, %30 : vector<16x16xi1>, vector<16x16xi32>
    %cst_17 = arith.constant dense<2147483647> : vector<16xi32>
    %32 = vector.multi_reduction <minsi>, %31, %cst_17 [1] : vector<16x16xi32> to vector<16xi32>
    %33 = vector.shape_cast %32 : vector<16xi32> to vector<16x1xi32>
    %34 = vector.broadcast %33 : vector<16x1xi32> to vector<16x16xi32>
    %35 = arith.cmpi eq, %24, %34 : vector<16x16xi32>
    %36 = arith.extui %35 : vector<16x16xi1> to vector<16x16xi32>
    %37 = arith.sitofp %36 : vector<16x16xi32> to vector<16x16xf32>
    %38 = arith.addf %25, %37 : vector<16x16xf32>
    %cst_18 = arith.constant 0.000000e+00 : f32
    %39 = vector.broadcast %cst_18 : f32 to vector<16x16xf32>
    %40 = arith.cmpf ogt, %37, %39 : vector<16x16xf32>
    %cst_19 = arith.constant -3.40282347E+38 : f32
    %41 = vector.broadcast %cst_19 : f32 to vector<16x16xf32>
    %42 = arith.select %40, %41, %23 : vector<16x16xi1>, vector<16x16xf32>
    %cst_20 = arith.constant dense<0xFF800000> : vector<16xf32>
    %43 = vector.multi_reduction <maximumf>, %42, %cst_20 [1] : vector<16x16xf32> to vector<16xf32>
    %44 = vector.shape_cast %43 : vector<16xf32> to vector<16x1xf32>
    %45 = vector.broadcast %44 : vector<16x1xf32> to vector<16x16xf32>
    %46 = arith.cmpf oeq, %42, %45 : vector<16x16xf32>
    %c16_i32_21 = arith.constant 16 : i32
    %47 = vector.broadcast %c16_i32_21 : i32 to vector<16x16xi32>
    %48 = arith.select %46, %24, %47 : vector<16x16xi1>, vector<16x16xi32>
    %cst_22 = arith.constant dense<2147483647> : vector<16xi32>
    %49 = vector.multi_reduction <minsi>, %48, %cst_22 [1] : vector<16x16xi32> to vector<16xi32>
    %50 = vector.shape_cast %49 : vector<16xi32> to vector<16x1xi32>
    %51 = vector.broadcast %50 : vector<16x1xi32> to vector<16x16xi32>
    %52 = arith.cmpi eq, %24, %51 : vector<16x16xi32>
    %53 = arith.extui %52 : vector<16x16xi1> to vector<16x16xi32>
    %54 = arith.sitofp %53 : vector<16x16xi32> to vector<16x16xf32>
    %55 = arith.addf %38, %54 : vector<16x16xf32>
    %56 = vector.extract_strided_slice %55 {offsets = [0, 0], sizes = [8, 16], strides = [1, 1]} : vector<16x16xf32> to vector<8x16xf32>
    %57 = vector.extract_strided_slice %55 {offsets = [8, 0], sizes = [8, 16], strides = [1, 1]} : vector<16x16xf32> to vector<8x16xf32>
    %58 = arith.addf %56, %57 : vector<8x16xf32>
    %59 = arith.truncf %58 : vector<8x16xf32> to vector<8x16xbf16>
    %c0_23 = arith.constant 0 : index
    %c0_24 = arith.constant 0 : index
    %60 = vector.load %arg6[%c0_23, %c0_24] : memref<16x32xbf16, #tpu.memory_space<vmem>>, vector<16x32xbf16>
    %cst_25 = arith.constant dense<0.000000e+00> : vector<8x32xf32>
    %61 = tpu.matmul %59, %60, %cst_25 {dimension_numbers = #tpu.dot_dimension_numbers<[1], [0], [0], [1], [0, 0, 1, 1], [], []>} : vector<8x16xbf16>, vector<16x32xbf16>, vector<8x32xf32> -> vector<8x32xf32>
    %62 = arith.extf %1 : vector<8x32xbf16> to vector<8x32xf32>
    %63 = arith.mulf %62, %61 : vector<8x32xf32>
    %64 = arith.truncf %63 : vector<8x32xf32> to vector<8x32xbf16>
    %c0_26 = arith.constant 0 : index
    %c0_27 = arith.constant 0 : index
    %c0_28 = arith.constant 0 : index
    %65 = vector.load %arg9[%c0_26, %c0_27, %c0_28] : memref<1x8x32xbf16, #tpu.memory_space<vmem>>, vector<1x8x32xbf16>
    %66 = vector.shape_cast %65 : vector<1x8x32xbf16> to vector<8x32xbf16>
    %67 = vector.shape_cast %64 : vector<8x32xbf16> to vector<1x8x32xbf16>
    tpu.vector_store %arg9[%c0_26, %c0_27, %c0_28], %67 {strides = array<i32>} : memref<1x8x32xbf16, #tpu.memory_space<vmem>>, vector<1x8x32xbf16>,
    return
  }
  func.func @transform_0(%arg0: i32, %arg1: i32) -> (i32, i32, i32) {
    %c0_i32 = arith.constant 0 : i32
    %c0_i32_0 = arith.constant 0 : i32
    return %arg0, %arg1, %c0_i32 : i32, i32, i32
  }
  func.func @transform_1(%arg0: i32, %arg1: i32) -> (i32, i32) {
    %c0_i32 = arith.constant 0 : i32
    %c0_i32_0 = arith.constant 0 : i32
    %c0_i32_1 = arith.constant 0 : i32
    return %c0_i32, %c0_i32_0 : i32, i32
  }
  func.func @transform_2(%arg0: i32, %arg1: i32) -> (i32, i32) {
    %c0_i32 = arith.constant 0 : i32
    %c0_i32_0 = arith.constant 0 : i32
    %c0_i32_1 = arith.constant 0 : i32
    return %c0_i32, %c0_i32_0 : i32, i32
  }
  func.func @transform_3(%arg0: i32, %arg1: i32) -> (i32, i32) {
    %c0_i32 = arith.constant 0 : i32
    %c0_i32_0 = arith.constant 0 : i32
    %c0_i32_1 = arith.constant 0 : i32
    return %c0_i32, %c0_i32_0 : i32, i32
  }
  func.func @transform_4(%arg0: i32, %arg1: i32) -> (i32, i32) {
    %c0_i32 = arith.constant 0 : i32
    %c0_i32_0 = arith.constant 0 : i32
    %c0_i32_1 = arith.constant 0 : i32
    return %c0_i32, %c0_i32_0 : i32, i32
  }
  func.func @transform_5(%arg0: i32, %arg1: i32) -> (i32, i32, i32) {
    %c0_i32 = arith.constant 0 : i32
    %c0_i32_0 = arith.constant 0 : i32
    return %arg0, %arg1, %c0_i32 : i32, i32, i32
  }
  func.func @transform_6(%arg0: i32, %arg1: i32) -> (i32, i32, i32) {
    %c0_i32 = arith.constant 0 : i32
    %c0_i32_0 = arith.constant 0 : i32
    return %arg0, %arg1, %c0_i32 : i32, i32, i32
  }
  func.func @transform_7(%arg0: i32, %arg1: i32) -> (i32, i32, i32) {
    %c0_i32 = arith.constant 0 : i32
    %c0_i32_0 = arith.constant 0 : i32
    return %arg0, %arg1, %c0_i32 : i32, i32, i32
  }
}

</mosaic_0001>

<llo_original>
// kernel: tpu_custom_call.1
$region0: #{tpu_custom_call.1}
  #allocation0 [shape = 'u32[]', space=smem, size = 0x4, offset = 0x4, fixed_abs, tag = 'smem constant byte address 0x4 - core index']
  #allocation1 [shape = 'u32[144,128]{1,0:T(1,128)}', space=vmem, size = 0x12000, scoped, tag = 'internal scratch']
  %s0 = inlined_call_operand.hbm [shape: bf16[2,8,32], index: 0, kind: input, shape index: {}]
  %s1 = inlined_call_operand.hbm [shape: bf16[32,96], index: 1, kind: input, shape index: {}]
  %s2 = inlined_call_operand.vmem [shape: f32[1,96], index: 2, kind: input, shape index: {}]
  %s3 = inlined_call_operand.hbm [shape: bf16[32,32], index: 3, kind: input, shape index: {}]
  %s4 = inlined_call_operand.vmem [shape: bf16[16,32], index: 4, kind: input, shape index: {}]
  %s5 = inlined_call_operand.hbm [shape: bf16[2,8,32], index: 5, kind: output, shape index: {0}]
  %s6 = inlined_call_operand.hbm [shape: bf16[2,8,32], index: 6, kind: output, shape index: {1}]
  %s7 = inlined_call_operand.hbm [shape: bf16[2,8,32], index: 7, kind: output, shape index: {2}]
  %8 = xla_tuple %s5, %s6, %s7
  %s9 = sld [smem:[#allocation0]]
  $region81: #{tpu_custom_call.1} parent=0
    _
  %s11 = ssub.s32 1, %s9
  %s12 = scalar_select 0, %s11, %s9
  $region1: #{tpu_custom_call.1} parent=0
    #allocation2 [shape = 'u8[4096]{0}', space=vmem, size = 0x1000, scoped, tag = 'input window, operand 0']
    #allocation3 [shape = 's32[2]{0}', space=sflag, size = 0x8, scoped, tag = 'scoped memory for tpu_custom_call.1']
    #allocation4 [shape = 's32[2]{0}', space=sflag, size = 0x8, scoped, tag = 'scoped memory for tpu_custom_call.1']
    #allocation5 [shape = 'u8[8192]{0}', space=vmem, size = 0x2000, scoped, tag = 'input window, operand 1, single buffered']
    #allocation6 [shape = 's32[1]{0}', space=sflag, size = 0x4, scoped, tag = 'scoped memory for tpu_custom_call.1']
    #allocation7 [shape = 'u8[8192]{0}', space=vmem, size = 0x2000, scoped, tag = 'input window, operand 3, single buffered']
    #allocation8 [shape = 'u8[4096]{0}', space=vmem, size = 0x1000, scoped, tag = 'output window, operand 0']
    #allocation9 [shape = 'u8[4096]{0}', space=vmem, size = 0x1000, scoped, tag = 'output window, operand 1']
    #allocation10 [shape = 's32[2]{0}', space=sflag, size = 0x8, scoped, tag = 'scoped memory for tpu_custom_call.1']
    #allocation11 [shape = 'u8[4096]{0}', space=vmem, size = 0x1000, scoped, tag = 'output window, operand 2']
    %13 = vsyncpa [#allocation3], 0
    %s14 = scalar_lea.sflag [#allocation3], 1
    %15 = vsyncpa %s14, 0
    %16 = vsyncpa [#allocation6], 0
    %17 = vsyncpa [#allocation4], 0
    %s18 = scalar_lea.sflag [#allocation4], 1
    %19 = vsyncpa %s18, 0
    %20 = vsyncpa [#allocation10], 0
    %s21 = scalar_lea.sflag [#allocation10], 1
    %22 = vsyncpa %s21, 0
    loop: start=0, step=1, limit=4
    $region2: #{tpu_custom_call.1} parent=1 // loop_pre_header
      _
    $region3: #{tpu_custom_call.1} parent=1 // loop_header
      %s24 = sphi 0, %s28
      %p25 = scmp.ge.s32.totalorder %s24, 4
      %s31 = sphi 0, %s43
      %s32 = sphi 0, %s39
      %s33 = sphi 0, %s31
      %s34 = sphi 0, %s32
      %s35 = sphi 0, %s33
      %s36 = sphi 0, %s34
      %s48 = sphi 0, %s50
      %s51 = sphi 0, %s48
      %s52 = sphi 0, %s51
      %s68 = sphi 0, %s52
      %s72 = sphi 0, %s72
      %s74 = sphi 0, %s72
      %s75 = sphi 0, %s74
      %s89 = sphi 0, %s75
      %s93 = sphi 0, %s93
      %s95 = sphi 0, %s93
      %s96 = sphi 0, %s95
      %s110 = sphi 0, %s96
      %s114 = sphi 0, %s114
      %s116 = sphi 0, %s114
      %s117 = sphi 0, %s116
      %s131 = sphi 0, %s117
      %s135 = sphi 0, %s135
      %s137 = sphi 0, %s135
      %s138 = sphi 0, %s137
      %s152 = sphi 0, %s138
      %s160 = sphi 0, %s162
      %s163 = sphi 0, %s160
      %s164 = sphi 0, %s163
      %s180 = sphi 0, %s164
      %s188 = sphi 0, %s190
      %s191 = sphi 0, %s188
      %s192 = sphi 0, %s191
      %s208 = sphi 0, %s192
      %s216 = sphi 0, %s218
      %s219 = sphi 0, %s216
      %s220 = sphi 0, %s219
      %s236 = sphi 0, %s220
    $region4: #{tpu_custom_call.1} parent=1 // loop_header_branch
      %27 = sbr.rel (%p25) target = $region8
    $region5: #{tpu_custom_call.1} parent=1 // loop_body
      %s29 = ssub.s32 %s24, 1
      %s30 = ssub.s32 %s24, 2
      %s37 = sadd.s32 1, %s32
      %p38 = scmp.ge.s32.totalorder %s37, 1
      %s39 = scalar_select %p38, 0, %s37
      %s40 = sadd.s32 1, %s31
      %s41 = scalar_select %p38, %s40, %s31
      %p42 = scmp.ge.s32.totalorder %s41, 2
      %s43 = scalar_select %p42, 0, %s41
      %s44 = ssub.s32 %s31, %s43
      %s45 = ssub.s32 %s32, %s39
      %s46 = sor.u32 %s44, %s45
      %p47 = scmp.eq.s32.totalorder %s46, 0
      %s49 = sadd.s32 %s48, 1
      %s50 = scalar_select %p47, %s48, %s49
      %p53 = pneg %p47
      %p54 = scmp.eq.s32.totalorder %s24, 1
      %p55 = por %p53, %p54
      %p56 = scmp.ne.s32.totalorder %s48, %s51
      %p57 = scmp.eq.s32.totalorder %s24, 0
      %p58 = por %p56, %p57
      %p59 = scmp.ne.s32.totalorder %s48, %s51
      %p60 = scmp.eq.s32.totalorder %s29, 1
      %p61 = por %p59, %p60
      %p62 = scmp.ne.s32.totalorder %s51, %s52
      %p63 = scmp.eq.s32.totalorder %s29, 0
      %p64 = por %p62, %p63
      %p65 = scmp.ne.s32.totalorder %s51, %s52
      %p66 = scmp.eq.s32.totalorder %s30, 1
      %p67 = por %p65, %p66
      %p69 = scmp.ne.s32.totalorder %s52, %s68
      %p70 = scmp.eq.s32.totalorder %s30, 0
      %p71 = por %p69, %p70
      %s73 = sadd.s32 %s72, 1
      %p76 = scmp.eq.s32.totalorder %s24, 1
      %p77 = scmp.ne.s32.totalorder %s72, %s74
      %p78 = scmp.eq.s32.totalorder %s24, 0
      %p79 = por %p77, %p78
      %p80 = scmp.ne.s32.totalorder %s72, %s74
      %p81 = scmp.eq.s32.totalorder %s29, 1
      %p82 = por %p80, %p81
      %p83 = scmp.ne.s32.totalorder %s74, %s75
      %p84 = scmp.eq.s32.totalorder %s29, 0
      %p85 = por %p83, %p84
      %p86 = scmp.ne.s32.totalorder %s74, %s75
      %p87 = scmp.eq.s32.totalorder %s30, 1
      %p88 = por %p86, %p87
      %p90 = scmp.ne.s32.totalorder %s75, %s89
      %p91 = scmp.eq.s32.totalorder %s30, 0
      %p92 = por %p90, %p91
      %s94 = sadd.s32 %s93, 1
      %p97 = scmp.eq.s32.totalorder %s24, 1
      %p98 = scmp.ne.s32.totalorder %s93, %s95
      %p99 = scmp.eq.s32.totalorder %s24, 0
      %p100 = por %p98, %p99
      %p101 = scmp.ne.s32.totalorder %s93, %s95
      %p102 = scmp.eq.s32.totalorder %s29, 1
      %p103 = por %p101, %p102
      %p104 = scmp.ne.s32.totalorder %s95, %s96
      %p105 = scmp.eq.s32.totalorder %s29, 0
      %p106 = por %p104, %p105
      %p107 = scmp.ne.s32.totalorder %s95, %s96
      %p108 = scmp.eq.s32.totalorder %s30, 1
      %p109 = por %p107, %p108
      %p111 = scmp.ne.s32.totalorder %s96, %s110
      %p112 = scmp.eq.s32.totalorder %s30, 0
      %p113 = por %p111, %p112
      %s115 = sadd.s32 %s114, 1
      %p118 = scmp.eq.s32.totalorder %s24, 1
      %p119 = scmp.ne.s32.totalorder %s114, %s116
      %p120 = scmp.eq.s32.totalorder %s24, 0
      %p121 = por %p119, %p120
      %p122 = scmp.ne.s32.totalorder %s114, %s116
      %p123 = scmp.eq.s32.totalorder %s29, 1
      %p124 = por %p122, %p123
      %p125 = scmp.ne.s32.totalorder %s116, %s117
      %p126 = scmp.eq.s32.totalorder %s29, 0
      %p127 = por %p125, %p126
      %p128 = scmp.ne.s32.totalorder %s116, %s117
      %p129 = scmp.eq.s32.totalorder %s30, 1
      %p130 = por %p128, %p129
      %p132 = scmp.ne.s32.totalorder %s117, %s131
      %p133 = scmp.eq.s32.totalorder %s30, 0
      %p134 = por %p132, %p133
      %s136 = sadd.s32 %s135, 1
      %p139 = scmp.eq.s32.totalorder %s24, 1
      %p140 = scmp.ne.s32.totalorder %s135, %s137
      %p141 = scmp.eq.s32.totalorder %s24, 0
      %p142 = por %p140, %p141
      %p143 = scmp.ne.s32.totalorder %s135, %s137
      %p144 = scmp.eq.s32.totalorder %s29, 1
      %p145 = por %p143, %p144
      %p146 = scmp.ne.s32.totalorder %s137, %s138
      %p147 = scmp.eq.s32.totalorder %s29, 0
      %p148 = por %p146, %p147
      %p149 = scmp.ne.s32.totalorder %s137, %s138
      %p150 = scmp.eq.s32.totalorder %s30, 1
      %p151 = por %p149, %p150
      %p153 = scmp.ne.s32.totalorder %s138, %s152
      %p154 = scmp.eq.s32.totalorder %s30, 0
      %p155 = por %p153, %p154
      %s156 = ssub.s32 %s31, %s43
      %s157 = ssub.s32 %s32, %s39
      %s158 = sor.u32 %s156, %s157
      %p159 = scmp.eq.s32.totalorder %s158, 0
      %s161 = sadd.s32 %s160, 1
      %s162 = scalar_select %p159, %s160, %s161
      %p165 = pneg %p159
      %p166 = scmp.eq.s32.totalorder %s24, 1
      %p167 = por %p165, %p166
      %p168 = scmp.ne.s32.totalorder %s160, %s163
      %p169 = scmp.eq.s32.totalorder %s24, 0
      %p170 = por %p168, %p169
      %p171 = scmp.ne.s32.totalorder %s160, %s163
      %p172 = scmp.eq.s32.totalorder %s29, 1
      %p173 = por %p171, %p172
      %p174 = scmp.ne.s32.totalorder %s163, %s164
      %p175 = scmp.eq.s32.totalorder %s29, 0
      %p176 = por %p174, %p175
      %p177 = scmp.ne.s32.totalorder %s163, %s164
      %p178 = scmp.eq.s32.totalorder %s30, 1
      %p179 = por %p177, %p178
      %p181 = scmp.ne.s32.totalorder %s164, %s180
      %p182 = scmp.eq.s32.totalorder %s30, 0
      %p183 = por %p181, %p182
      %s184 = ssub.s32 %s31, %s43
      %s185 = ssub.s32 %s32, %s39
      %s186 = sor.u32 %s184, %s185
      %p187 = scmp.eq.s32.totalorder %s186, 0
      %s189 = sadd.s32 %s188, 1
      %s190 = scalar_select %p187, %s188, %s189
      %p193 = pneg %p187
      %p194 = scmp.eq.s32.totalorder %s24, 1
      %p195 = por %p193, %p194
      %p196 = scmp.ne.s32.totalorder %s188, %s191
      %p197 = scmp.eq.s32.totalorder %s24, 0
      %p198 = por %p196, %p197
      %p199 = scmp.ne.s32.totalorder %s188, %s191
      %p200 = scmp.eq.s32.totalorder %s29, 1
      %p201 = por %p199, %p200
      %p202 = scmp.ne.s32.totalorder %s191, %s192
      %p203 = scmp.eq.s32.totalorder %s29, 0
      %p204 = por %p202, %p203
      %p205 = scmp.ne.s32.totalorder %s191, %s192
      %p206 = scmp.eq.s32.totalorder %s30, 1
      %p207 = por %p205, %p206
      %p209 = scmp.ne.s32.totalorder %s192, %s208
      %p210 = scmp.eq.s32.totalorder %s30, 0
      %p211 = por %p209, %p210
      %s212 = ssub.s32 %s31, %s43
      %s213 = ssub.s32 %s32, %s39
      %s214 = sor.u32 %s212, %s213
      %p215 = scmp.eq.s32.totalorder %s214, 0
      %s217 = sadd.s32 %s216, 1
      %s218 = scalar_select %p215, %s216, %s217
      %p221 = pneg %p215
      %p222 = scmp.eq.s32.totalorder %s24, 1
      %p223 = por %p221, %p222
      %p224 = scmp.ne.s32.totalorder %s216, %s219
      %p225 = scmp.eq.s32.totalorder %s24, 0
      %p226 = por %p224, %p225
      %p227 = scmp.ne.s32.totalorder %s216, %s219
      %p228 = scmp.eq.s32.totalorder %s29, 1
      %p229 = por %p227, %p228
      %p230 = scmp.ne.s32.totalorder %s219, %s220
      %p231 = scmp.eq.s32.totalorder %s29, 0
      %p232 = por %p230, %p231
      %p233 = scmp.ne.s32.totalorder %s219, %s220
      %p234 = scmp.eq.s32.totalorder %s30, 1
      %p235 = por %p233, %p234
      %p237 = scmp.ne.s32.totalorder %s220, %s236
      %p238 = scmp.eq.s32.totalorder %s30, 0
      %p239 = por %p237, %p238
      %p240 = scmp.le.s32.totalorder 1, %s24
      %p241 = scmp.lt.s32.totalorder %s24, 3
      %p242 = pnand %p240, %p241
      %p243 = pneg %p242
      // Predicated region
      $region9: #{tpu_custom_call.1} parent=5 // pred_check
        _
      $region10: #{tpu_custom_call.1} parent=5 // pred_check_branch
        %245 = sbr.rel (%p242) target = $region12
      $region11: #{tpu_custom_call.1} parent=5 // pred_region
        %s246 = ssub.s32 %s24, 1
        // Predicated region
        $region13: #{tpu_custom_call.1} parent=11 // pred_check
          %p247 = pneg %p85
        $region14: #{tpu_custom_call.1} parent=11 // pred_check_branch
          %249 = sbr.rel (%p247) target = $region16
        $region15: #{tpu_custom_call.1} parent=11 // pred_region
          %s251 = ssub.s32 256, 256
          %252 = vsyncadd [#allocation6], %s251
          %s253 = sshll.u32 [#allocation5], 4
          %s254 = int_to_ptr.vmem [resolvable:$true] %s253
          %259 = dma.hbm_to_vmem [thread:$0]  %s1, 256, %s254, [#allocation6], 64, 64, 4
        $region16: #{tpu_custom_call.1} parent=11 // pred_fallthru
          _
        // Predicated region
        $region17: #{tpu_custom_call.1} parent=11 // pred_check
          %p260 = pneg %p106
        $region18: #{tpu_custom_call.1} parent=11 // pred_check_branch
          %262 = sbr.rel (%p260) target = $region20
        $region19: #{tpu_custom_call.1} parent=11 // pred_region
          _
        $region20: #{tpu_custom_call.1} parent=11 // pred_fallthru
          _
        // Predicated region
        $region21: #{tpu_custom_call.1} parent=11 // pred_check
          %p263 = pneg %p127
        $region22: #{tpu_custom_call.1} parent=11 // pred_check_branch
          %265 = sbr.rel (%p263) target = $region24
        $region23: #{tpu_custom_call.1} parent=11 // pred_region
          %s267 = ssub.s32 256, 256
          %268 = vsyncadd [#allocation6], %s267
          %s269 = sshll.u32 [#allocation7], 4
          %s270 = int_to_ptr.vmem [resolvable:$true] %s269
          %275 = dma.hbm_to_vmem [thread:$0]  %s3, 256, %s270, [#allocation6], 64, 64, 4
        $region24: #{tpu_custom_call.1} parent=11 // pred_fallthru
          _
        // Predicated region
        $region25: #{tpu_custom_call.1} parent=11 // pred_check
          %p276 = pneg %p148
        $region26: #{tpu_custom_call.1} parent=11 // pred_check_branch
          %278 = sbr.rel (%p276) target = $region28
        $region27: #{tpu_custom_call.1} parent=11 // pred_region
          _
        $region28: #{tpu_custom_call.1} parent=11 // pred_fallthru
          _
      $region12: #{tpu_custom_call.1} parent=5 // pred_fallthru
        _
      %p279 = scmp.lt.s32.totalorder %s24, 2
      // Predicated region
      $region29: #{tpu_custom_call.1} parent=5 // pred_check
        %p280 = pneg %p279
      $region30: #{tpu_custom_call.1} parent=5 // pred_check_branch
        %282 = sbr.rel (%p280) target = $region32
      $region31: #{tpu_custom_call.1} parent=5 // pred_region
        // Predicated region
        $region33: #{tpu_custom_call.1} parent=31 // pred_check
          %p283 = pneg %p58
        $region34: #{tpu_custom_call.1} parent=31 // pred_check_branch
          %285 = sbr.rel (%p283) target = $region36
        $region35: #{tpu_custom_call.1} parent=31 // pred_region
          %s286 = sand.u32 %s48, 1
          %s287 = scalar_lea.sflag [#allocation3], %s286
          %s288 = sand.u32 %s48, 1
          %s289 = smul.addr %s288, 4
          %s290 = scalar_lea.vmem [#allocation2], %s289
          %s292 = ssub.s32 64, 64
          %293 = vsyncadd %s287, %s292
          %s294 = sadd.s32 %s32, %s31
          %s295 = smul.addr %s294, 64
          %s296 = scalar_lea.hbm %s0, %s295
          %s298 = sshll.u32 %s290, 4
          %s299 = int_to_ptr.vmem [resolvable:$true] %s298
          %301 = dma.hbm_to_vmem [thread:$0]  %s296, 64, %s299, %s287
        $region36: #{tpu_custom_call.1} parent=31 // pred_fallthru
          _
      $region32: #{tpu_custom_call.1} parent=5 // pred_fallthru
        _
      %p302 = scmp.le.s32.totalorder 1, %s24
      %p303 = scmp.lt.s32.totalorder %s24, 3
      %p304 = pnand %p302, %p303
      %p305 = pneg %p304
      // Predicated region
      $region37: #{tpu_custom_call.1} parent=5 // pred_check
        _
      $region38: #{tpu_custom_call.1} parent=5 // pred_check_branch
        %307 = sbr.rel (%p304) target = $region40
      $region39: #{tpu_custom_call.1} parent=5 // pred_region
        %s308 = ssub.s32 %s24, 1
        %s309 = sand.u32 %s51, 1
        %s310 = scalar_lea.sflag [#allocation3], %s309
        %s311 = sand.u32 %s51, 1
        %s312 = smul.addr %s311, 4
        %s313 = scalar_lea.vmem [#allocation2], %s312
        // Predicated region
        $region41: #{tpu_custom_call.1} parent=39 // pred_check
          %p314 = pneg %p64
        $region42: #{tpu_custom_call.1} parent=39 // pred_check_branch
          %316 = sbr.rel (%p314) target = $region44
        $region43: #{tpu_custom_call.1} parent=39 // pred_region
          %317 = dma.done %s310, 64
        $region44: #{tpu_custom_call.1} parent=39 // pred_fallthru
          _
        // Predicated region
        $region45: #{tpu_custom_call.1} parent=39 // pred_check
          %p318 = pneg %p85
        $region46: #{tpu_custom_call.1} parent=39 // pred_check_branch
          %320 = sbr.rel (%p318) target = $region48
        $region47: #{tpu_custom_call.1} parent=39 // pred_region
          %321 = dma.done [#allocation6], 256
        $region48: #{tpu_custom_call.1} parent=39 // pred_fallthru
          _
        // Predicated region
        $region49: #{tpu_custom_call.1} parent=39 // pred_check
          %p322 = pneg %p127
        $region50: #{tpu_custom_call.1} parent=39 // pred_check_branch
          %324 = sbr.rel (%p322) target = $region52
        $region51: #{tpu_custom_call.1} parent=39 // pred_region
          %325 = dma.done [#allocation6], 256
        $region52: #{tpu_custom_call.1} parent=39 // pred_fallthru
          _
        %s326 = sand.u32 %s51, 1
        %s327 = scalar_lea.sflag [#allocation3], %s326
        %s328 = sand.u32 %s51, 1
        %s329 = smul.addr %s328, 4
        %s330 = scalar_lea.vmem [#allocation2], %s329
        %p331 = pneg %p64
        %p332 = pneg %p61
        %p333 = pneg %p85
        %p334 = pneg %p82
        %p335 = pneg %p106
        %p336 = pneg %p103
        %p337 = pneg %p127
        %p338 = pneg %p124
        %p339 = pneg %p148
        %p340 = pneg %p145
        %p341 = pneg %p176
        %p342 = pneg %p173
        %s343 = sand.u32 %s163, 1
        %s344 = scalar_lea.sflag [#allocation4], %s343
        %s345 = sand.u32 %s163, 1
        %s346 = smul.addr %s345, 4
        %s347 = scalar_lea.vmem [#allocation8], %s346
        %p348 = pneg %p204
        %p349 = pneg %p201
        %s350 = sand.u32 %s29, 1
        %s351 = scalar_lea.sflag [#allocation10], %s350
        %s352 = sand.u32 %s191, 1
        %s353 = smul.addr %s352, 4
        %s354 = scalar_lea.vmem [#allocation9], %s353
        %p355 = pneg %p232
        %p356 = pneg %p229
        %s357 = sand.u32 %s29, 1
        %s358 = scalar_lea.sflag [#allocation10], %s357
        %s359 = sand.u32 %s219, 1
        %s360 = smul.addr %s359, 4
        %s361 = scalar_lea.vmem [#allocation11], %s360
        %v363 = vld [vmem:[%s313] sm:$0xf]
        %v364 = vld [vmem:[#allocation5] sm:$0xf]
        %v365 = vld [vmem:[#allocation5 + $0x4] sm:$0xf]
        %v366 = vld [vmem:[#allocation5 + $0x8] sm:$0xf]
        %v367 = vld [vmem:[#allocation5 + $0xc] sm:$0xf]
        %v368 = vld [vmem:[%s2] sm:$0x1]
        %v370 = vlaneseq
        %v371 = vshrl.u32 %v370, 7
        %v372 = vsub.s32 0, %v371
        %v373 = vrot.slane %v368, %v372
        %v379 = vunpack.c.l.b16 %v364
        %v380 = vunpack.c.l.b16 %v365
        %v381 = vunpack.c.l.b16 %v366
        %v382 = vunpack.c.l.b16 %v367
        %v383 = vpack.c.b16 %v380, %v379
        %v384 = vpack.c.b16 %v382, %v381
        %vm387 = vcmask 261120
        %v389 = vsel %vm387, %v363, 0
        %391 = vmatprep.subr.bf16.mxu0 0
        %392 = vmatpush1.bf16.msra.mxu0 %v383
        %393 = vmatprep.subr.bf16.mxu0 0
        %394 = vmatpush1.bf16.msra.mxu0 %v384
        %395 = vmatprep.subr.bf16.mxu0 0
        %396 = vmatpush1.bf16.msra.mxu0 0
        %397 = vmatprep.subr.bf16.mxu0 0
        %398 = vmatpush1.bf16.msra.mxu0 0
        %399 = vmatprep.subr.bf16.mxu0 0
        %400 = vmatpush1.bf16.msra.mxu0 0
        %401 = vmatprep.subr.bf16.mxu0 0
        %402 = vmatpush1.bf16.msra.mxu0 0
        %403 = vmatprep.subr.bf16.mxu0 0
        %404 = vmatpush1.bf16.msra.mxu0 0
        %405 = vmatprep.subr.bf16.mxu0 0
        %406 = vmatpush1.bf16.msra.mxu0 0
        %407 = vmatprep.subr.bf16.mxu0 0
        %408 = vmatpush1.bf16.msra.mxu0 0
        %409 = vmatprep.subr.bf16.mxu0 0
        %410 = vmatpush1.bf16.msra.mxu0 0
        %411 = vmatprep.subr.bf16.mxu0 0
        %412 = vmatpush1.bf16.msra.mxu0 0
        %413 = vmatprep.subr.bf16.mxu0 0
        %414 = vmatpush1.bf16.msra.mxu0 0
        %415 = vmatprep.subr.bf16.mxu0 0
        %416 = vmatpush1.bf16.msra.mxu0 0
        %417 = vmatprep.subr.bf16.mxu0 0
        %418 = vmatpush1.bf16.msra.mxu0 0
        %419 = vmatprep.subr.bf16.mxu0 0
        %420 = vmatpush1.bf16.msra.mxu0 0
        %421 = vmatprep.subr.bf16.mxu0 0
        %422 = vmatpush1.bf16.msra.mxu0 0
        %423 = vmatprep.mubr.bf16.mxu0 0
        %424 = vmatmul.mubr.bf16.gmra.mrb[0].mxu0 %v389
        %v425 = vpop.f32.mrb[0].mxu0
        %v426 = vadd.f32 %v373, %v425
        %v427 = vpop.f32.mrb[0].mxu0
        %v428 = vpop.f32.mrb[0].mxu0
        %v429 = vpop.f32.mrb[0].mxu0
        %430 = vdwg.mxu0
        %v431 = vpack.c.bf16 %v426, %v426
        %vm432 = vcmask 257024
        %433 = vst.msk [vmem:[%s347] sm:$0xf] %vm432, %v431
        %v435 = vunpack.c.l.b16 %v431
        %v436 = vpack.c.b16 %v435, %v435
        %437 = vrot.lane.b32.xlu0 %v436, 96
        %v438 = vpop.permute.xlu0 %437
        %440 = vst.msk [vmem:[%s354] sm:$0xf] %vm432, %v438
        %v441 = vld [vmem:[#allocation7] sm:$0xf]
        %v442 = vld [vmem:[#allocation7 + $0x4] sm:$0xf]
        %v443 = vld [vmem:[#allocation7 + $0x8] sm:$0xf]
        %v444 = vld [vmem:[#allocation7 + $0xc] sm:$0xf]
        %445 = vrot.lane.b32.xlu0 %v431, 64
        %v446 = vpop.permute.xlu0 %445
        %v451 = vunpack.c.l.b16 %v441
        %v452 = vunpack.c.l.b16 %v442
        %v453 = vunpack.c.l.b16 %v443
        %v454 = vunpack.c.l.b16 %v444
        %v455 = vpack.c.b16 %v452, %v451
        %v456 = vpack.c.b16 %v454, %v453
        %v460 = vsel %vm387, %v446, 0
        %462 = vmatprep.subr.bf16.mxu0 0
        %463 = vmatpush1.bf16.msra.mxu0 %v455
        %464 = vmatprep.subr.bf16.mxu0 0
        %465 = vmatpush1.bf16.msra.mxu0 %v456
        %466 = vmatprep.subr.bf16.mxu0 0
        %467 = vmatpush1.bf16.msra.mxu0 0
        %468 = vmatprep.subr.bf16.mxu0 0
        %469 = vmatpush1.bf16.msra.mxu0 0
        %470 = vmatprep.subr.bf16.mxu0 0
        %471 = vmatpush1.bf16.msra.mxu0 0
        %472 = vmatprep.subr.bf16.mxu0 0
        %473 = vmatpush1.bf16.msra.mxu0 0
        %474 = vmatprep.subr.bf16.mxu0 0
        %475 = vmatpush1.bf16.msra.mxu0 0
        %476 = vmatprep.subr.bf16.mxu0 0
        %477 = vmatpush1.bf16.msra.mxu0 0
        %478 = vmatprep.subr.bf16.mxu0 0
        %479 = vmatpush1.bf16.msra.mxu0 0
        %480 = vmatprep.subr.bf16.mxu0 0
        %481 = vmatpush1.bf16.msra.mxu0 0
        %482 = vmatprep.subr.bf16.mxu0 0
        %483 = vmatpush1.bf16.msra.mxu0 0
        %484 = vmatprep.subr.bf16.mxu0 0
        %485 = vmatpush1.bf16.msra.mxu0 0
        %486 = vmatprep.subr.bf16.mxu0 0
        %487 = vmatpush1.bf16.msra.mxu0 0
        %488 = vmatprep.subr.bf16.mxu0 0
        %489 = vmatpush1.bf16.msra.mxu0 0
        %490 = vmatprep.subr.bf16.mxu0 0
        %491 = vmatpush1.bf16.msra.mxu0 0
        %492 = vmatprep.subr.bf16.mxu0 0
        %493 = vmatpush1.bf16.msra.mxu0 0
        %494 = vmatprep.mubr.bf16.mxu0 0
        %495 = vmatmul.mubr.bf16.gmra.mrb[0].mxu0 %v460
        %v496 = vpop.f32.mrb[0].mxu0
        %v497 = vadd.f32 0.0, %v496
        %v498 = vpop.f32.mrb[0].mxu0
        %v499 = vpop.f32.mrb[0].mxu0
        %v500 = vpop.f32.mrb[0].mxu0
        %501 = vdwg.mxu0
        %503 = vrot.lane.b32.xlu0 %v497, 112
        %v504 = vpop.permute.xlu0 %503
        %v506 = vlaneseq
        %v507 = vand.u32 %v506, 127
        %vm508 = vcmask 130048
        %v509 = vsel %vm508, %v497, -inf
        %510 = vmax.xlane.f32.xlu0 %v509
        %v511 = vpop.xlane.xlu0 %510
        %v512 = vsel %vm508, %v504, -inf
        %513 = vmax.xlane.f32.xlu0 %v512
        %v514 = vpop.xlane.xlu0 %513
        %vm515 = vcmp.eq.f32.partialorder %v497, %v511
        %vm516 = vcmp.eq.f32.partialorder %v504, %v514
        %v517 = vsel %vm515, %v507, 16
        %v518 = vsel %vm516, %v507, 16
        %v519 = vsel %vm508, %v517, 2147483647
        %v520 = vand.u32 %v519, 65535
        %v521 = vshra.s32 %v519, 16
        %v522 = vcvt.s32.f32 %v520
        %v523 = vcvt.s32.f32 %v521
        %524 = vmin.xlane.f32.xlu0 %v523
        %v525 = vpop.xlane.xlu0 %524
        %vm526 = vcmp.eq.f32.partialorder %v523, %v525
        %v527 = vsel %vm526, %v522, inf
        %528 = vmin.xlane.f32.xlu0 %v527
        %v529 = vpop.xlane.xlu0 %528
        %v530 = vcvt.f32.s32 %v529
        %v531 = vcvt.f32.s32 %v525
        %v532 = vshll.u32 %v531, 16
        %v533 = vadd.s32 %v532, %v530
        %v534 = vsel %vm508, %v518, 2147483647
        %v535 = vand.u32 %v534, 65535
        %v536 = vshra.s32 %v534, 16
        %v537 = vcvt.s32.f32 %v535
        %v538 = vcvt.s32.f32 %v536
        %539 = vmin.xlane.f32.xlu0 %v538
        %v540 = vpop.xlane.xlu0 %539
        %vm541 = vcmp.eq.f32.partialorder %v538, %v540
        %v542 = vsel %vm541, %v537, inf
        %543 = vmin.xlane.f32.xlu0 %v542
        %v544 = vpop.xlane.xlu0 %543
        %v545 = vcvt.f32.s32 %v544
        %v546 = vcvt.f32.s32 %v540
        %v547 = vshll.u32 %v546, 16
        %v548 = vadd.s32 %v547, %v545
        %vm549 = vcmp.eq.s32.totalorder %v507, %v533
        %vm550 = vcmp.eq.s32.totalorder %v507, %v548
        %v551 = vsel %vm549, 1, 0
        %v552 = vsel %vm550, 1, 0
        %v553 = vcvt.s32.f32 %v551
        %v554 = vcvt.s32.f32 %v552
        %v555 = vadd.f32 %v553, 0.0
        %v556 = vadd.f32 %v554, 0.0
        %vm557 = vcmp.gt.f32.partialorder %v553, 0.0
        %vm558 = vcmp.gt.f32.partialorder %v554, 0.0
        %v559 = vsel %vm557, -3.4028235e+38, %v497
        %v560 = vsel %vm558, -3.4028235e+38, %v504
        %v561 = vsel %vm508, %v559, -inf
        %562 = vmax.xlane.f32.xlu0 %v561
        %v563 = vpop.xlane.xlu0 %562
        %v564 = vsel %vm508, %v560, -inf
        %565 = vmax.xlane.f32.xlu0 %v564
        %v566 = vpop.xlane.xlu0 %565
        %vm567 = vcmp.eq.f32.partialorder %v559, %v563
        %vm568 = vcmp.eq.f32.partialorder %v560, %v566
        %v569 = vsel %vm567, %v507, 16
        %v570 = vsel %vm568, %v507, 16
        %v571 = vsel %vm508, %v569, 2147483647
        %v572 = vand.u32 %v571, 65535
        %v573 = vshra.s32 %v571, 16
        %v574 = vcvt.s32.f32 %v572
        %v575 = vcvt.s32.f32 %v573
        %576 = vmin.xlane.f32.xlu0 %v575
        %v577 = vpop.xlane.xlu0 %576
        %vm578 = vcmp.eq.f32.partialorder %v575, %v577
        %v579 = vsel %vm578, %v574, inf
        %580 = vmin.xlane.f32.xlu0 %v579
        %v581 = vpop.xlane.xlu0 %580
        %v582 = vcvt.f32.s32 %v581
        %v583 = vcvt.f32.s32 %v577
        %v584 = vshll.u32 %v583, 16
        %v585 = vadd.s32 %v584, %v582
        %v586 = vsel %vm508, %v570, 2147483647
        %v587 = vand.u32 %v586, 65535
        %v588 = vshra.s32 %v586, 16
        %v589 = vcvt.s32.f32 %v587
        %v590 = vcvt.s32.f32 %v588
        %591 = vmin.xlane.f32.xlu0 %v590
        %v592 = vpop.xlane.xlu0 %591
        %vm593 = vcmp.eq.f32.partialorder %v590, %v592
        %v594 = vsel %vm593, %v589, inf
        %595 = vmin.xlane.f32.xlu0 %v594
        %v596 = vpop.xlane.xlu0 %595
        %v597 = vcvt.f32.s32 %v596
        %v598 = vcvt.f32.s32 %v592
        %v599 = vshll.u32 %v598, 16
        %v600 = vadd.s32 %v599, %v597
        %vm601 = vcmp.eq.s32.totalorder %v507, %v585
        %vm602 = vcmp.eq.s32.totalorder %v507, %v600
        %v603 = vsel %vm601, 1, 0
        %v604 = vsel %vm602, 1, 0
        %v605 = vcvt.s32.f32 %v603
        %v606 = vcvt.s32.f32 %v604
        %v607 = vadd.f32 %v555, %v605
        %v608 = vadd.f32 %v556, %v606
        %v609 = vadd.f32 %v607, %v608
        %v610 = vpack.c.bf16 %v609, %v609
        %v611 = vld [vmem:[%s4] sm:$0xf]
        %v612 = vld [vmem:[%s4 + $0x4] sm:$0xf]
        %v615 = vunpack.c.l.b16 %v611
        %v616 = vunpack.c.l.b16 %v612
        %v617 = vpack.c.b16 %v616, %v615
        %v620 = vsel %vm508, %v610, 0
        %622 = vmatprep.subr.bf16.mxu0 0
        %623 = vmatpush1.bf16.msra.mxu0 %v617
        %624 = vmatprep.subr.bf16.mxu0 0
        %625 = vmatpush1.bf16.msra.mxu0 0
        %626 = vmatprep.subr.bf16.mxu0 0
        %627 = vmatpush1.bf16.msra.mxu0 0
        %628 = vmatprep.subr.bf16.mxu0 0
        %629 = vmatpush1.bf16.msra.mxu0 0
        %630 = vmatprep.subr.bf16.mxu0 0
        %631 = vmatpush1.bf16.msra.mxu0 0
        %632 = vmatprep.subr.bf16.mxu0 0
        %633 = vmatpush1.bf16.msra.mxu0 0
        %634 = vmatprep.subr.bf16.mxu0 0
        %635 = vmatpush1.bf16.msra.mxu0 0
        %636 = vmatprep.subr.bf16.mxu0 0
        %637 = vmatpush1.bf16.msra.mxu0 0
        %638 = vmatprep.subr.bf16.mxu0 0
        %639 = vmatpush1.bf16.msra.mxu0 0
        %640 = vmatprep.subr.bf16.mxu0 0
        %641 = vmatpush1.bf16.msra.mxu0 0
        %642 = vmatprep.subr.bf16.mxu0 0
        %643 = vmatpush1.bf16.msra.mxu0 0
        %644 = vmatprep.subr.bf16.mxu0 0
        %645 = vmatpush1.bf16.msra.mxu0 0
        %646 = vmatprep.subr.bf16.mxu0 0
        %647 = vmatpush1.bf16.msra.mxu0 0
        %648 = vmatprep.subr.bf16.mxu0 0
        %649 = vmatpush1.bf16.msra.mxu0 0
        %650 = vmatprep.subr.bf16.mxu0 0
        %651 = vmatpush1.bf16.msra.mxu0 0
        %652 = vmatprep.subr.bf16.mxu0 0
        %653 = vmatpush1.bf16.msra.mxu0 0
        %654 = vmatprep.mubr.bf16.mxu0 0
        %655 = vmatmul.mubr.bf16.gmra.mrb[0].mxu0 %v620
        %v656 = vpop.f32.mrb[0].mxu0
        %v657 = vadd.f32 0.0, %v656
        %v658 = vpop.f32.mrb[0].mxu0
        %v659 = vpop.f32.mrb[0].mxu0
        %v660 = vpop.f32.mrb[0].mxu0
        %661 = vdwg.mxu0
        %v662 = vunpack.c.l.bf16 %v363
        %v663 = vmul.f32 %v662, %v657
        %v664 = vpack.c.bf16 %v663, %v663
        %665 = vst.msk [vmem:[%s361] sm:$0xf] %vm432, %v664
        %s666 = sand.u32 %s163, 1
        %s667 = scalar_lea.sflag [#allocation4], %s666
        %s668 = sand.u32 %s163, 1
        %s669 = smul.addr %s668, 4
        %s670 = scalar_lea.vmem [#allocation8], %s669
        %s671 = sand.u32 %s29, 1
        %s672 = scalar_lea.sflag [#allocation10], %s671
        %s673 = sand.u32 %s191, 1
        %s674 = smul.addr %s673, 4
        %s675 = scalar_lea.vmem [#allocation9], %s674
        %s676 = sand.u32 %s29, 1
        %s677 = scalar_lea.sflag [#allocation10], %s676
        %s678 = sand.u32 %s219, 1
        %s679 = smul.addr %s678, 4
        %s680 = scalar_lea.vmem [#allocation11], %s679
        // Predicated region
        $region53: #{tpu_custom_call.1} parent=39 // pred_check
          %p681 = pneg %p173
        $region54: #{tpu_custom_call.1} parent=39 // pred_check_branch
          %683 = sbr.rel (%p681) target = $region56
        $region55: #{tpu_custom_call.1} parent=39 // pred_region
          %s685 = ssub.s32 64, 64
          %686 = vsyncadd %s667, %s685
          %s687 = sadd.s32 %s34, %s33
          %s688 = smul.addr %s687, 64
          %s689 = scalar_lea.hbm %s5, %s688
          %s691 = sshll.u32 %s670, 4
          %s692 = int_to_ptr.vmem [resolvable:$true] %s691
          %694 = dma.vmem_to_hbm [thread:$0]  %s692, 64, %s689, %s667
        $region56: #{tpu_custom_call.1} parent=39 // pred_fallthru
          _
        // Predicated region
        $region57: #{tpu_custom_call.1} parent=39 // pred_check
          %p695 = pneg %p201
        $region58: #{tpu_custom_call.1} parent=39 // pred_check_branch
          %697 = sbr.rel (%p695) target = $region60
        $region59: #{tpu_custom_call.1} parent=39 // pred_region
          %s699 = ssub.s32 64, 64
          %700 = vsyncadd %s672, %s699
          %s701 = sadd.s32 %s34, %s33
          %s702 = smul.addr %s701, 64
          %s703 = scalar_lea.hbm %s6, %s702
          %s705 = sshll.u32 %s675, 4
          %s706 = int_to_ptr.vmem [resolvable:$true] %s705
          %708 = dma.vmem_to_hbm [thread:$0]  %s706, 64, %s703, %s672
        $region60: #{tpu_custom_call.1} parent=39 // pred_fallthru
          _
        // Predicated region
        $region61: #{tpu_custom_call.1} parent=39 // pred_check
          %p709 = pneg %p229
        $region62: #{tpu_custom_call.1} parent=39 // pred_check_branch
          %711 = sbr.rel (%p709) target = $region64
        $region63: #{tpu_custom_call.1} parent=39 // pred_region
          %s713 = ssub.s32 64, 64
          %714 = vsyncadd %s677, %s713
          %s715 = sadd.s32 %s34, %s33
          %s716 = smul.addr %s715, 64
          %s717 = scalar_lea.hbm %s7, %s716
          %s719 = sshll.u32 %s680, 4
          %s720 = int_to_ptr.vmem [resolvable:$true] %s719
          %722 = dma.vmem_to_hbm [thread:$0]  %s720, 64, %s717, %s677
        $region64: #{tpu_custom_call.1} parent=39 // pred_fallthru
          _
      $region40: #{tpu_custom_call.1} parent=5 // pred_fallthru
        _
      %p723 = scmp.le.s32.totalorder 2, %s24
      // Predicated region
      $region65: #{tpu_custom_call.1} parent=5 // pred_check
        %p724 = pneg %p723
      $region66: #{tpu_custom_call.1} parent=5 // pred_check_branch
        %726 = sbr.rel (%p724) target = $region68
      $region67: #{tpu_custom_call.1} parent=5 // pred_region
        %s727 = ssub.s32 %s24, 2
        // Predicated region
        $region69: #{tpu_custom_call.1} parent=67 // pred_check
          %p728 = pneg %p179
        $region70: #{tpu_custom_call.1} parent=67 // pred_check_branch
          %730 = sbr.rel (%p728) target = $region72
        $region71: #{tpu_custom_call.1} parent=67 // pred_region
          %s731 = sand.u32 %s164, 1
          %s732 = scalar_lea.sflag [#allocation4], %s731
          %s733 = sand.u32 %s164, 1
          %s734 = smul.addr %s733, 4
          %s735 = scalar_lea.vmem [#allocation8], %s734
          %736 = dma.done %s732, 64
        $region72: #{tpu_custom_call.1} parent=67 // pred_fallthru
          _
        // Predicated region
        $region73: #{tpu_custom_call.1} parent=67 // pred_check
          %p737 = pneg %p207
        $region74: #{tpu_custom_call.1} parent=67 // pred_check_branch
          %739 = sbr.rel (%p737) target = $region76
        $region75: #{tpu_custom_call.1} parent=67 // pred_region
          %s740 = sand.u32 %s30, 1
          %s741 = scalar_lea.sflag [#allocation10], %s740
          %s742 = sand.u32 %s192, 1
          %s743 = smul.addr %s742, 4
          %s744 = scalar_lea.vmem [#allocation9], %s743
          %745 = dma.done %s741, 64
        $region76: #{tpu_custom_call.1} parent=67 // pred_fallthru
          _
        // Predicated region
        $region77: #{tpu_custom_call.1} parent=67 // pred_check
          %p746 = pneg %p235
        $region78: #{tpu_custom_call.1} parent=67 // pred_check_branch
          %748 = sbr.rel (%p746) target = $region80
        $region79: #{tpu_custom_call.1} parent=67 // pred_region
          %s749 = sand.u32 %s30, 1
          %s750 = scalar_lea.sflag [#allocation10], %s749
          %s751 = sand.u32 %s220, 1
          %s752 = smul.addr %s751, 4
          %s753 = scalar_lea.vmem [#allocation11], %s752
          %754 = dma.done %s750, 64
        $region80: #{tpu_custom_call.1} parent=67 // pred_fallthru
          _
      $region68: #{tpu_custom_call.1} parent=5 // pred_fallthru
        _
    $region6: #{tpu_custom_call.1} parent=1 // loop_footer
      %s28 = sadd.s32 1, %s24
    $region7: #{tpu_custom_call.1} parent=1 // loop_footer_branch
      %23 = sbr.rel target = $region3
    $region8: #{tpu_custom_call.1} parent=1 // loop_exit
      _
    %755 = vsyncpa [#allocation3], 1
    %s756 = scalar_lea.sflag [#allocation3], 1
    %757 = vsyncpa %s756, 1
    %758 = vsyncpa [#allocation6], 1
    %759 = vsyncpa [#allocation4], 1
    %s760 = scalar_lea.sflag [#allocation4], 1
    %761 = vsyncpa %s760, 1
    %762 = vsyncpa [#allocation10], 1
    %s763 = scalar_lea.sflag [#allocation10], 1
    %764 = vsyncpa %s763, 1

// kernel: tpu_custom_call.1
$region0: #{tpu_custom_call.1}
  #allocation0 [shape = 'u32[]', space=smem, size = 0x4, offset = 0x4, fixed_abs, tag = 'smem constant byte address 0x4 - core index']
  #allocation1 [shape = 'u32[144,128]{1,0:T(1,128)}', space=vmem, size = 0x12000, scoped, tag = 'internal scratch']
  %s0 = inlined_call_operand.hbm [shape: bf16[2,8,32], index: 0, kind: input, shape index: {}]
  %s1 = inlined_call_operand.hbm [shape: bf16[32,96], index: 1, kind: input, shape index: {}]
  %s2 = inlined_call_operand.vmem [shape: f32[1,96], index: 2, kind: input, shape index: {}]
  %s3 = inlined_call_operand.hbm [shape: bf16[32,32], index: 3, kind: input, shape index: {}]
  %s4 = inlined_call_operand.vmem [shape: bf16[16,32], index: 4, kind: input, shape index: {}]
  %s5 = inlined_call_operand.hbm [shape: bf16[2,8,32], index: 5, kind: output, shape index: {0}]
  %s6 = inlined_call_operand.hbm [shape: bf16[2,8,32], index: 6, kind: output, shape index: {1}]
  %s7 = inlined_call_operand.hbm [shape: bf16[2,8,32], index: 7, kind: output, shape index: {2}]
  %8 = xla_tuple %s5, %s6, %s7
  %s9 = sld [smem:[#allocation0]]
  $region81: #{tpu_custom_call.1} parent=0
    _
  %s11 = ssub.s32 1, %s9
  %s12 = scalar_select 0, %s11, %s9
  $region1: #{tpu_custom_call.1} parent=0
    #allocation2 [shape = 'u8[4096]{0}', space=vmem, size = 0x1000, scoped, tag = 'input window, operand 0']
    #allocation3 [shape = 's32[2]{0}', space=sflag, size = 0x8, scoped, tag = 'scoped memory for tpu_custom_call.1']
    #allocation4 [shape = 's32[2]{0}', space=sflag, size = 0x8, scoped, tag = 'scoped memory for tpu_custom_call.1']
    #allocation5 [shape = 'u8[8192]{0}', space=vmem, size = 0x2000, scoped, tag = 'input window, operand 1, single buffered']
    #allocation6 [shape = 's32[1]{0}', space=sflag, size = 0x4, scoped, tag = 'scoped memory for tpu_custom_call.1']
    #allocation7 [shape = 'u8[8192]{0}', space=vmem, size = 0x2000, scoped, tag = 'input window, operand 3, single buffered']
    #allocation8 [shape = 'u8[4096]{0}', space=vmem, size = 0x1000, scoped, tag = 'output window, operand 0']
    #allocation9 [shape = 'u8[4096]{0}', space=vmem, size = 0x1000, scoped, tag = 'output window, operand 1']
    #allocation10 [shape = 's32[2]{0}', space=sflag, size = 0x8, scoped, tag = 'scoped memory for tpu_custom_call.1']
    #allocation11 [shape = 'u8[4096]{0}', space=vmem, size = 0x1000, scoped, tag = 'output window, operand 2']
    %13 = vsyncpa [#allocation3], 0
    %s14 = scalar_lea.sflag [#allocation3], 1
    %15 = vsyncpa %s14, 0
    %16 = vsyncpa [#allocation6], 0
    %17 = vsyncpa [#allocation4], 0
    %s18 = scalar_lea.sflag [#allocation4], 1
    %19 = vsyncpa %s18, 0
    %20 = vsyncpa [#allocation10], 0
    %s21 = scalar_lea.sflag [#allocation10], 1
    %22 = vsyncpa %s21, 0
    loop: start=0, step=1, limit=4
    $region2: #{tpu_custom_call.1} parent=1 // loop_pre_header
      _
    $region3: #{tpu_custom_call.1} parent=1 // loop_header
      %s24 = sphi 0, %s28
      %p25 = scmp.ge.s32.totalorder %s24, 4
      %s31 = sphi 0, %s43
      %s32 = sphi 0, %s39
      %s33 = sphi 0, %s31
      %s34 = sphi 0, %s32
      %s35 = sphi 0, %s33
      %s36 = sphi 0, %s34
      %s48 = sphi 0, %s50
      %s51 = sphi 0, %s48
      %s52 = sphi 0, %s51
      %s68 = sphi 0, %s52
      %s72 = sphi 0, %s72
      %s74 = sphi 0, %s72
      %s75 = sphi 0, %s74
      %s89 = sphi 0, %s75
      %s93 = sphi 0, %s93
      %s95 = sphi 0, %s93
      %s96 = sphi 0, %s95
      %s110 = sphi 0, %s96
      %s114 = sphi 0, %s114
      %s116 = sphi 0, %s114
      %s117 = sphi 0, %s116
      %s131 = sphi 0, %s117
      %s135 = sphi 0, %s135
      %s137 = sphi 0, %s135
      %s138 = sphi 0, %s137
      %s152 = sphi 0, %s138
      %s160 = sphi 0, %s162
      %s163 = sphi 0, %s160
      %s164 = sphi 0, %s163
      %s180 = sphi 0, %s164
      %s188 = sphi 0, %s190
      %s191 = sphi 0, %s188
      %s192 = sphi 0, %s191
      %s208 = sphi 0, %s192
      %s216 = sphi 0, %s218
      %s219 = sphi 0, %s216
      %s220 = sphi 0, %s219
      %s236 = sphi 0, %s220
    $region4: #{tpu_custom_call.1} parent=1 // loop_header_branch
      %27 = sbr.rel (%p25) target = $region8
    $region5: #{tpu_custom_call.1} parent=1 // loop_body
      %s29 = ssub.s32 %s24, 1
      %s30 = ssub.s32 %s24, 2
      %s37 = sadd.s32 1, %s32
      %p38 = scmp.ge.s32.totalorder %s37, 1
      %s39 = scalar_select %p38, 0, %s37
      %s40 = sadd.s32 1, %s31
      %s41 = scalar_select %p38, %s40, %s31
      %p42 = scmp.ge.s32.totalorder %s41, 2
      %s43 = scalar_select %p42, 0, %s41
      %s44 = ssub.s32 %s31, %s43
      %s45 = ssub.s32 %s32, %s39
      %s46 = sor.u32 %s44, %s45
      %p47 = scmp.eq.s32.totalorder %s46, 0
      %s49 = sadd.s32 %s48, 1
      %s50 = scalar_select %p47, %s48, %s49
      %p53 = pneg %p47
      %p54 = scmp.eq.s32.totalorder %s24, 1
      %p55 = por %p53, %p54
      %p56 = scmp.ne.s32.totalorder %s48, %s51
      %p57 = scmp.eq.s32.totalorder %s24, 0
      %p58 = por %p56, %p57
      %p59 = scmp.ne.s32.totalorder %s48, %s51
      %p60 = scmp.eq.s32.totalorder %s29, 1
      %p61 = por %p59, %p60
      %p62 = scmp.ne.s32.totalorder %s51, %s52
      %p63 = scmp.eq.s32.totalorder %s29, 0
      %p64 = por %p62, %p63
      %p65 = scmp.ne.s32.totalorder %s51, %s52
      %p66 = scmp.eq.s32.totalorder %s30, 1
      %p67 = por %p65, %p66
      %p69 = scmp.ne.s32.totalorder %s52, %s68
      %p70 = scmp.eq.s32.totalorder %s30, 0
      %p71 = por %p69, %p70
      %s73 = sadd.s32 %s72, 1
      %p76 = scmp.eq.s32.totalorder %s24, 1
      %p77 = scmp.ne.s32.totalorder %s72, %s74
      %p78 = scmp.eq.s32.totalorder %s24, 0
      %p79 = por %p77, %p78
      %p80 = scmp.ne.s32.totalorder %s72, %s74
      %p81 = scmp.eq.s32.totalorder %s29, 1
      %p82 = por %p80, %p81
      %p83 = scmp.ne.s32.totalorder %s74, %s75
      %p84 = scmp.eq.s32.totalorder %s29, 0
      %p85 = por %p83, %p84
      %p86 = scmp.ne.s32.totalorder %s74, %s75
      %p87 = scmp.eq.s32.totalorder %s30, 1
      %p88 = por %p86, %p87
      %p90 = scmp.ne.s32.totalorder %s75, %s89
      %p91 = scmp.eq.s32.totalorder %s30, 0
      %p92 = por %p90, %p91
      %s94 = sadd.s32 %s93, 1
      %p97 = scmp.eq.s32.totalorder %s24, 1
      %p98 = scmp.ne.s32.totalorder %s93, %s95
      %p99 = scmp.eq.s32.totalorder %s24, 0
      %p100 = por %p98, %p99
      %p101 = scmp.ne.s32.totalorder %s93, %s95
      %p102 = scmp.eq.s32.totalorder %s29, 1
      %p103 = por %p101, %p102
      %p104 = scmp.ne.s32.totalorder %s95, %s96
      %p105 = scmp.eq.s32.totalorder %s29, 0
      %p106 = por %p104, %p105
      %p107 = scmp.ne.s32.totalorder %s95, %s96
      %p108 = scmp.eq.s32.totalorder %s30, 1
      %p109 = por %p107, %p108
      %p111 = scmp.ne.s32.totalorder %s96, %s110
      %p112 = scmp.eq.s32.totalorder %s30, 0
      %p113 = por %p111, %p112
      %s115 = sadd.s32 %s114, 1
      %p118 = scmp.eq.s32.totalorder %s24, 1
      %p119 = scmp.ne.s32.totalorder %s114, %s116
      %p120 = scmp.eq.s32.totalorder %s24, 0
      %p121 = por %p119, %p120
      %p122 = scmp.ne.s32.totalorder %s114, %s116
      %p123 = scmp.eq.s32.totalorder %s29, 1
      %p124 = por %p122, %p123
      %p125 = scmp.ne.s32.totalorder %s116, %s117
      %p126 = scmp.eq.s32.totalorder %s29, 0
      %p127 = por %p125, %p126
      %p128 = scmp.ne.s32.totalorder %s116, %s117
      %p129 = scmp.eq.s32.totalorder %s30, 1
      %p130 = por %p128, %p129
      %p132 = scmp.ne.s32.totalorder %s117, %s131
      %p133 = scmp.eq.s32.totalorder %s30, 0
      %p134 = por %p132, %p133
      %s136 = sadd.s32 %s135, 1
      %p139 = scmp.eq.s32.totalorder %s24, 1
      %p140 = scmp.ne.s32.totalorder %s135, %s137
      %p141 = scmp.eq.s32.totalorder %s24, 0
      %p142 = por %p140, %p141
      %p143 = scmp.ne.s32.totalorder %s135, %s137
      %p144 = scmp.eq.s32.totalorder %s29, 1
      %p145 = por %p143, %p144
      %p146 = scmp.ne.s32.totalorder %s137, %s138
      %p147 = scmp.eq.s32.totalorder %s29, 0
      %p148 = por %p146, %p147
      %p149 = scmp.ne.s32.totalorder %s137, %s138
      %p150 = scmp.eq.s32.totalorder %s30, 1
      %p151 = por %p149, %p150
      %p153 = scmp.ne.s32.totalorder %s138, %s152
      %p154 = scmp.eq.s32.totalorder %s30, 0
      %p155 = por %p153, %p154
      %s156 = ssub.s32 %s31, %s43
      %s157 = ssub.s32 %s32, %s39
      %s158 = sor.u32 %s156, %s157
      %p159 = scmp.eq.s32.totalorder %s158, 0
      %s161 = sadd.s32 %s160, 1
      %s162 = scalar_select %p159, %s160, %s161
      %p165 = pneg %p159
      %p166 = scmp.eq.s32.totalorder %s24, 1
      %p167 = por %p165, %p166
      %p168 = scmp.ne.s32.totalorder %s160, %s163
      %p169 = scmp.eq.s32.totalorder %s24, 0
      %p170 = por %p168, %p169
      %p171 = scmp.ne.s32.totalorder %s160, %s163
      %p172 = scmp.eq.s32.totalorder %s29, 1
      %p173 = por %p171, %p172
      %p174 = scmp.ne.s32.totalorder %s163, %s164
      %p175 = scmp.eq.s32.totalorder %s29, 0
      %p176 = por %p174, %p175
      %p177 = scmp.ne.s32.totalorder %s163, %s164
      %p178 = scmp.eq.s32.totalorder %s30, 1
      %p179 = por %p177, %p178
      %p181 = scmp.ne.s32.totalorder %s164, %s180
      %p182 = scmp.eq.s32.totalorder %s30, 0
      %p183 = por %p181, %p182
      %s184 = ssub.s32 %s31, %s43
      %s185 = ssub.s32 %s32, %s39
      %s186 = sor.u32 %s184, %s185
      %p187 = scmp.eq.s32.totalorder %s186, 0
      %s189 = sadd.s32 %s188, 1
      %s190 = scalar_select %p187, %s188, %s189
      %p193 = pneg %p187
      %p194 = scmp.eq.s32.totalorder %s24, 1
      %p195 = por %p193, %p194
      %p196 = scmp.ne.s32.totalorder %s188, %s191
      %p197 = scmp.eq.s32.totalorder %s24, 0
      %p198 = por %p196, %p197
      %p199 = scmp.ne.s32.totalorder %s188, %s191
      %p200 = scmp.eq.s32.totalorder %s29, 1
      %p201 = por %p199, %p200
      %p202 = scmp.ne.s32.totalorder %s191, %s192
      %p203 = scmp.eq.s32.totalorder %s29, 0
      %p204 = por %p202, %p203
      %p205 = scmp.ne.s32.totalorder %s191, %s192
      %p206 = scmp.eq.s32.totalorder %s30, 1
      %p207 = por %p205, %p206
      %p209 = scmp.ne.s32.totalorder %s192, %s208
      %p210 = scmp.eq.s32.totalorder %s30, 0
      %p211 = por %p209, %p210
      %s212 = ssub.s32 %s31, %s43
      %s213 = ssub.s32 %s32, %s39
      %s214 = sor.u32 %s212, %s213
      %p215 = scmp.eq.s32.totalorder %s214, 0
      %s217 = sadd.s32 %s216, 1
      %s218 = scalar_select %p215, %s216, %s217
      %p221 = pneg %p215
      %p222 = scmp.eq.s32.totalorder %s24, 1
      %p223 = por %p221, %p222
      %p224 = scmp.ne.s32.totalorder %s216, %s219
      %p225 = scmp.eq.s32.totalorder %s24, 0
      %p226 = por %p224, %p225
      %p227 = scmp.ne.s32.totalorder %s216, %s219
      %p228 = scmp.eq.s32.totalorder %s29, 1
      %p229 = por %p227, %p228
      %p230 = scmp.ne.s32.totalorder %s219, %s220
      %p231 = scmp.eq.s32.totalorder %s29, 0
      %p232 = por %p230, %p231
      %p233 = scmp.ne.s32.totalorder %s219, %s220
      %p234 = scmp.eq.s32.totalorder %s30, 1
      %p235 = por %p233, %p234
      %p237 = scmp.ne.s32.totalorder %s220, %s236
      %p238 = scmp.eq.s32.totalorder %s30, 0
      %p239 = por %p237, %p238
      %p240 = scmp.le.s32.totalorder 1, %s24
      %p241 = scmp.lt.s32.totalorder %s24, 3
      %p242 = pnand %p240, %p241
      %p243 = pneg %p242
      // Predicated region
      $region9: #{tpu_custom_call.1} parent=5 // pred_check
        _
      $region10: #{tpu_custom_call.1} parent=5 // pred_check_branch
        %245 = sbr.rel (%p242) target = $region12
      $region11: #{tpu_custom_call.1} parent=5 // pred_region
        %s246 = ssub.s32 %s24, 1
        // Predicated region
        $region13: #{tpu_custom_call.1} parent=11 // pred_check
          %p247 = pneg %p85
        $region14: #{tpu_custom_call.1} parent=11 // pred_check_branch
          %249 = sbr.rel (%p247) target = $region16
        $region15: #{tpu_custom_call.1} parent=11 // pred_region
          %s251 = ssub.s32 256, 256
          %252 = vsyncadd [#allocation6], %s251
          %s253 = sshll.u32 [#allocation5], 4
          %s254 = int_to_ptr.vmem [resolvable:$true] %s253
          %259 = dma.hbm_to_vmem [thread:$0]  %s1, 256, %s254, [#allocation6], 64, 64, 4
        $region16: #{tpu_custom_call.1} parent=11 // pred_fallthru
          _
        // Predicated region
        $region17: #{tpu_custom_call.1} parent=11 // pred_check
          %p260 = pneg %p106
        $region18: #{tpu_custom_call.1} parent=11 // pred_check_branch
          %262 = sbr.rel (%p260) target = $region20
        $region19: #{tpu_custom_call.1} parent=11 // pred_region
          _
        $region20: #{tpu_custom_call.1} parent=11 // pred_fallthru
          _
        // Predicated region
        $region21: #{tpu_custom_call.1} parent=11 // pred_check
          %p263 = pneg %p127
        $region22: #{tpu_custom_call.1} parent=11 // pred_check_branch
          %265 = sbr.rel (%p263) target = $region24
        $region23: #{tpu_custom_call.1} parent=11 // pred_region
          %s267 = ssub.s32 256, 256
          %268 = vsyncadd [#allocation6], %s267
          %s269 = sshll.u32 [#allocation7], 4
          %s270 = int_to_ptr.vmem [resolvable:$true] %s269
          %275 = dma.hbm_to_vmem [thread:$0]  %s3, 256, %s270, [#allocation6], 64, 64, 4
        $region24: #{tpu_custom_call.1} parent=11 // pred_fallthru
          _
        // Predicated region
        $region25: #{tpu_custom_call.1} parent=11 // pred_check
          %p276 = pneg %p148
        $region26: #{tpu_custom_call.1} parent=11 // pred_check_branch
          %278 = sbr.rel (%p276) target = $region28
        $region27: #{tpu_custom_call.1} parent=11 // pred_region
          _
        $region28: #{tpu_custom_call.1} parent=11 // pred_fallthru
          _
      $region12: #{tpu_custom_call.1} parent=5 // pred_fallthru
        _
      %p279 = scmp.lt.s32.totalorder %s24, 2
      // Predicated region
      $region29: #{tpu_custom_call.1} parent=5 // pred_check
        %p280 = pneg %p279
      $region30: #{tpu_custom_call.1} parent=5 // pred_check_branch
        %282 = sbr.rel (%p280) target = $region32
      $region31: #{tpu_custom_call.1} parent=5 // pred_region
        // Predicated region
        $region33: #{tpu_custom_call.1} parent=31 // pred_check
          %p283 = pneg %p58
        $region34: #{tpu_custom_call.1} parent=31 // pred_check_branch
          %285 = sbr.rel (%p283) target = $region36
        $region35: #{tpu_custom_call.1} parent=31 // pred_region
          %s286 = sand.u32 %s48, 1
          %s287 = scalar_lea.sflag [#allocation3], %s286
          %s288 = sand.u32 %s48, 1
          %s289 = smul.addr %s288, 4
          %s290 = scalar_lea.vmem [#allocation2], %s289
          %s292 = ssub.s32 64, 64
          %293 = vsyncadd %s287, %s292
          %s294 = sadd.s32 %s32, %s31
          %s295 = smul.addr %s294, 64
          %s296 = scalar_lea.hbm %s0, %s295
          %s298 = sshll.u32 %s290, 4
          %s299 = int_to_ptr.vmem [resolvable:$true] %s298
          %301 = dma.hbm_to_vmem [thread:$0]  %s296, 64, %s299, %s287
        $region36: #{tpu_custom_call.1} parent=31 // pred_fallthru
          _
      $region32: #{tpu_custom_call.1} parent=5 // pred_fallthru
        _
      %p302 = scmp.le.s32.totalorder 1, %s24
      %p303 = scmp.lt.s32.totalorder %s24, 3
      %p304 = pnand %p302, %p303
      %p305 = pneg %p304
      // Predicated region
      $region37: #{tpu_custom_call.1} parent=5 // pred_check
        _
      $region38: #{tpu_custom_call.1} parent=5 // pred_check_branch
        %307 = sbr.rel (%p304) target = $region40
      $region39: #{tpu_custom_call.1} parent=5 // pred_region
        %s308 = ssub.s32 %s24, 1
        %s309 = sand.u32 %s51, 1
        %s310 = scalar_lea.sflag [#allocation3], %s309
        %s311 = sand.u32 %s51, 1
        %s312 = smul.addr %s311, 4
        %s313 = scalar_lea.vmem [#allocation2], %s312
        // Predicated region
        $region41: #{tpu_custom_call.1} parent=39 // pred_check
          %p314 = pneg %p64
        $region42: #{tpu_custom_call.1} parent=39 // pred_check_branch
          %316 = sbr.rel (%p314) target = $region44
        $region43: #{tpu_custom_call.1} parent=39 // pred_region
          %317 = dma.done %s310, 64
        $region44: #{tpu_custom_call.1} parent=39 // pred_fallthru
          _
        // Predicated region
        $region45: #{tpu_custom_call.1} parent=39 // pred_check
          %p318 = pneg %p85
        $region46: #{tpu_custom_call.1} parent=39 // pred_check_branch
          %320 = sbr.rel (%p318) target = $region48
        $region47: #{tpu_custom_call.1} parent=39 // pred_region
          %321 = dma.done [#allocation6], 256
        $region48: #{tpu_custom_call.1} parent=39 // pred_fallthru
          _
        // Predicated region
        $region49: #{tpu_custom_call.1} parent=39 // pred_check
          %p322 = pneg %p127
        $region50: #{tpu_custom_call.1} parent=39 // pred_check_branch
          %324 = sbr.rel (%p322) target = $region52
        $region51: #{tpu_custom_call.1} parent=39 // pred_region
          %325 = dma.done [#allocation6], 256
        $region52: #{tpu_custom_call.1} parent=39 // pred_fallthru
          _
        %s326 = sand.u32 %s51, 1
        %s327 = scalar_lea.sflag [#allocation3], %s326
        %s328 = sand.u32 %s51, 1
        %s329 = smul.addr %s328, 4
        %s330 = scalar_lea.vmem [#allocation2], %s329
        %p331 = pneg %p64
        %p332 = pneg %p61
        %p333 = pneg %p85
        %p334 = pneg %p82
        %p335 = pneg %p106
        %p336 = pneg %p103
        %p337 = pneg %p127
        %p338 = pneg %p124
        %p339 = pneg %p148
        %p340 = pneg %p145
        %p341 = pneg %p176
        %p342 = pneg %p173
        %s343 = sand.u32 %s163, 1
        %s344 = scalar_lea.sflag [#allocation4], %s343
        %s345 = sand.u32 %s163, 1
        %s346 = smul.addr %s345, 4
        %s347 = scalar_lea.vmem [#allocation8], %s346
        %p348 = pneg %p204
        %p349 = pneg %p201
        %s350 = sand.u32 %s29, 1
        %s351 = scalar_lea.sflag [#allocation10], %s350
        %s352 = sand.u32 %s191, 1
        %s353 = smul.addr %s352, 4
        %s354 = scalar_lea.vmem [#allocation9], %s353
        %p355 = pneg %p232
        %p356 = pneg %p229
        %s357 = sand.u32 %s29, 1
        %s358 = scalar_lea.sflag [#allocation10], %s357
        %s359 = sand.u32 %s219, 1
        %s360 = smul.addr %s359, 4
        %s361 = scalar_lea.vmem [#allocation11], %s360
        %v363 = vld [vmem:[%s313] sm:$0xf]
        %v364 = vld [vmem:[#allocation5] sm:$0xf]
        %v365 = vld [vmem:[#allocation5 + $0x4] sm:$0xf]
        %v366 = vld [vmem:[#allocation5 + $0x8] sm:$0xf]
        %v367 = vld [vmem:[#allocation5 + $0xc] sm:$0xf]
        %v368 = vld [vmem:[%s2] sm:$0x1]
        %v370 = vlaneseq
        %v371 = vshrl.u32 %v370, 7
        %v372 = vsub.s32 0, %v371
        %v373 = vrot.slane %v368, %v372
        %v379 = vunpack.c.l.b16 %v364
        %v380 = vunpack.c.l.b16 %v365
        %v381 = vunpack.c.l.b16 %v366
        %v382 = vunpack.c.l.b16 %v367
        %v383 = vpack.c.b16 %v380, %v379
        %v384 = vpack.c.b16 %v382, %v381
        %vm387 = vcmask 261120
        %v389 = vsel %vm387, %v363, 0
        %391 = vmatprep.subr.bf16.mxu0 0
        %392 = vmatpush1.bf16.msra.mxu0 %v383
        %393 = vmatprep.subr.bf16.mxu0 0
        %394 = vmatpush1.bf16.msra.mxu0 %v384
        %395 = vmatprep.subr.bf16.mxu0 0
        %396 = vmatpush1.bf16.msra.mxu0 0
        %397 = vmatprep.subr.bf16.mxu0 0
        %398 = vmatpush1.bf16.msra.mxu0 0
        %399 = vmatprep.subr.bf16.mxu0 0
        %400 = vmatpush1.bf16.msra.mxu0 0
        %401 = vmatprep.subr.bf16.mxu0 0
        %402 = vmatpush1.bf16.msra.mxu0 0
        %403 = vmatprep.subr.bf16.mxu0 0
        %404 = vmatpush1.bf16.msra.mxu0 0
        %405 = vmatprep.subr.bf16.mxu0 0
        %406 = vmatpush1.bf16.msra.mxu0 0
        %407 = vmatprep.subr.bf16.mxu0 0
        %408 = vmatpush1.bf16.msra.mxu0 0
        %409 = vmatprep.subr.bf16.mxu0 0
        %410 = vmatpush1.bf16.msra.mxu0 0
        %411 = vmatprep.subr.bf16.mxu0 0
        %412 = vmatpush1.bf16.msra.mxu0 0
        %413 = vmatprep.subr.bf16.mxu0 0
        %414 = vmatpush1.bf16.msra.mxu0 0
        %415 = vmatprep.subr.bf16.mxu0 0
        %416 = vmatpush1.bf16.msra.mxu0 0
        %417 = vmatprep.subr.bf16.mxu0 0
        %418 = vmatpush1.bf16.msra.mxu0 0
        %419 = vmatprep.subr.bf16.mxu0 0
        %420 = vmatpush1.bf16.msra.mxu0 0
        %421 = vmatprep.subr.bf16.mxu0 0
        %422 = vmatpush1.bf16.msra.mxu0 0
        %423 = vmatprep.mubr.bf16.mxu0 0
        %424 = vmatmul.mubr.bf16.gmra.mrb[0].mxu0 %v389
        %v425 = vpop.f32.mrb[0].mxu0
        %v426 = vadd.f32 %v373, %v425
        %v427 = vpop.f32.mrb[0].mxu0
        %v428 = vpop.f32.mrb[0].mxu0
        %v429 = vpop.f32.mrb[0].mxu0
        %430 = vdwg.mxu0
        %v431 = vpack.c.bf16 %v426, %v426
        %vm432 = vcmask 257024
        %433 = vst.msk [vmem:[%s347] sm:$0xf] %vm432, %v431
        %v435 = vunpack.c.l.b16 %v431
        %v436 = vpack.c.b16 %v435, %v435
        %437 = vrot.lane.b32.xlu0 %v436, 96
        %v438 = vpop.permute.xlu0 %437
        %440 = vst.msk [vmem:[%s354] sm:$0xf] %vm432, %v438
        %v441 = vld [vmem:[#allocation7] sm:$0xf]
        %v442 = vld [vmem:[#allocation7 + $0x4] sm:$0xf]
        %v443 = vld [vmem:[#allocation7 + $0x8] sm:$0xf]
        %v444 = vld [vmem:[#allocation7 + $0xc] sm:$0xf]
        %445 = vrot.lane.b32.xlu0 %v431, 64
        %v446 = vpop.permute.xlu0 %445
        %v451 = vunpack.c.l.b16 %v441
        %v452 = vunpack.c.l.b16 %v442
        %v453 = vunpack.c.l.b16 %v443
        %v454 = vunpack.c.l.b16 %v444
        %v455 = vpack.c.b16 %v452, %v451
        %v456 = vpack.c.b16 %v454, %v453
        %v460 = vsel %vm387, %v446, 0
        %462 = vmatprep.subr.bf16.mxu0 0
        %463 = vmatpush1.bf16.msra.mxu0 %v455
        %464 = vmatprep.subr.bf16.mxu0 0
        %465 = vmatpush1.bf16.msra.mxu0 %v456
        %466 = vmatprep.subr.bf16.mxu0 0
        %467 = vmatpush1.bf16.msra.mxu0 0
        %468 = vmatprep.subr.bf16.mxu0 0
        %469 = vmatpush1.bf16.msra.mxu0 0
        %470 = vmatprep.subr.bf16.mxu0 0
        %471 = vmatpush1.bf16.msra.mxu0 0
        %472 = vmatprep.subr.bf16.mxu0 0
        %473 = vmatpush1.bf16.msra.mxu0 0
        %474 = vmatprep.subr.bf16.mxu0 0
        %475 = vmatpush1.bf16.msra.mxu0 0
        %476 = vmatprep.subr.bf16.mxu0 0
        %477 = vmatpush1.bf16.msra.mxu0 0
        %478 = vmatprep.subr.bf16.mxu0 0
        %479 = vmatpush1.bf16.msra.mxu0 0
        %480 = vmatprep.subr.bf16.mxu0 0
        %481 = vmatpush1.bf16.msra.mxu0 0
        %482 = vmatprep.subr.bf16.mxu0 0
        %483 = vmatpush1.bf16.msra.mxu0 0
        %484 = vmatprep.subr.bf16.mxu0 0
        %485 = vmatpush1.bf16.msra.mxu0 0
        %486 = vmatprep.subr.bf16.mxu0 0
        %487 = vmatpush1.bf16.msra.mxu0 0
        %488 = vmatprep.subr.bf16.mxu0 0
        %489 = vmatpush1.bf16.msra.mxu0 0
        %490 = vmatprep.subr.bf16.mxu0 0
        %491 = vmatpush1.bf16.msra.mxu0 0
        %492 = vmatprep.subr.bf16.mxu0 0
        %493 = vmatpush1.bf16.msra.mxu0 0
        %494 = vmatprep.mubr.bf16.mxu0 0
        %495 = vmatmul.mubr.bf16.gmra.mrb[0].mxu0 %v460
        %v496 = vpop.f32.mrb[0].mxu0
        %v497 = vadd.f32 0.0, %v496
        %v498 = vpop.f32.mrb[0].mxu0
        %v499 = vpop.f32.mrb[0].mxu0
        %v500 = vpop.f32.mrb[0].mxu0
        %501 = vdwg.mxu0
        %503 = vrot.lane.b32.xlu0 %v497, 112
        %v504 = vpop.permute.xlu0 %503
        %v506 = vlaneseq
        %v507 = vand.u32 %v506, 127
        %vm508 = vcmask 130048
        %v509 = vsel %vm508, %v497, -inf
        %510 = vmax.xlane.f32.xlu0 %v509
        %v511 = vpop.xlane.xlu0 %510
        %v512 = vsel %vm508, %v504, -inf
        %513 = vmax.xlane.f32.xlu0 %v512
        %v514 = vpop.xlane.xlu0 %513
        %vm515 = vcmp.eq.f32.partialorder %v497, %v511
        %vm516 = vcmp.eq.f32.partialorder %v504, %v514
        %v517 = vsel %vm515, %v507, 16
        %v518 = vsel %vm516, %v507, 16
        %v519 = vsel %vm508, %v517, 2147483647
        %v520 = vand.u32 %v519, 65535
        %v521 = vshra.s32 %v519, 16
        %v522 = vcvt.s32.f32 %v520
        %v523 = vcvt.s32.f32 %v521
        %524 = vmin.xlane.f32.xlu0 %v523
        %v525 = vpop.xlane.xlu0 %524
        %vm526 = vcmp.eq.f32.partialorder %v523, %v525
        %v527 = vsel %vm526, %v522, inf
        %528 = vmin.xlane.f32.xlu0 %v527
        %v529 = vpop.xlane.xlu0 %528
        %v530 = vcvt.f32.s32 %v529
        %v531 = vcvt.f32.s32 %v525
        %v532 = vshll.u32 %v531, 16
        %v533 = vadd.s32 %v532, %v530
        %v534 = vsel %vm508, %v518, 2147483647
        %v535 = vand.u32 %v534, 65535
        %v536 = vshra.s32 %v534, 16
        %v537 = vcvt.s32.f32 %v535
        %v538 = vcvt.s32.f32 %v536
        %539 = vmin.xlane.f32.xlu0 %v538
        %v540 = vpop.xlane.xlu0 %539
        %vm541 = vcmp.eq.f32.partialorder %v538, %v540
        %v542 = vsel %vm541, %v537, inf
        %543 = vmin.xlane.f32.xlu0 %v542
        %v544 = vpop.xlane.xlu0 %543
        %v545 = vcvt.f32.s32 %v544
        %v546 = vcvt.f32.s32 %v540
        %v547 = vshll.u32 %v546, 16
        %v548 = vadd.s32 %v547, %v545
        %vm549 = vcmp.eq.s32.totalorder %v507, %v533
        %vm550 = vcmp.eq.s32.totalorder %v507, %v548
        %v551 = vsel %vm549, 1, 0
        %v552 = vsel %vm550, 1, 0
        %v553 = vcvt.s32.f32 %v551
        %v554 = vcvt.s32.f32 %v552
        %v555 = vadd.f32 %v553, 0.0
        %v556 = vadd.f32 %v554, 0.0
        %vm557 = vcmp.gt.f32.partialorder %v553, 0.0
        %vm558 = vcmp.gt.f32.partialorder %v554, 0.0
        %v559 = vsel %vm557, -3.4028235e+38, %v497
        %v560 = vsel %vm558, -3.4028235e+38, %v504
        %v561 = vsel %vm508, %v559, -inf
        %562 = vmax.xlane.f32.xlu0 %v561
        %v563 = vpop.xlane.xlu0 %562
        %v564 = vsel %vm508, %v560, -inf
        %565 = vmax.xlane.f32.xlu0 %v564
        %v566 = vpop.xlane.xlu0 %565
        %vm567 = vcmp.eq.f32.partialorder %v559, %v563
        %vm568 = vcmp.eq.f32.partialorder %v560, %v566
        %v569 = vsel %vm567, %v507, 16
        %v570 = vsel %vm568, %v507, 16
        %v571 = vsel %vm508, %v569, 2147483647
        %v572 = vand.u32 %v571, 65535
        %v573 = vshra.s32 %v571, 16
        %v574 = vcvt.s32.f32 %v572
        %v575 = vcvt.s32.f32 %v573
        %576 = vmin.xlane.f32.xlu0 %v575
        %v577 = vpop.xlane.xlu0 %576
        %vm578 = vcmp.eq.f32.partialorder %v575, %v577
        %v579 = vsel %vm578, %v574, inf
        %580 = vmin.xlane.f32.xlu0 %v579
        %v581 = vpop.xlane.xlu0 %580
        %v582 = vcvt.f32.s32 %v581
        %v583 = vcvt.f32.s32 %v577
        %v584 = vshll.u32 %v583, 16
        %v585 = vadd.s32 %v584, %v582
        %v586 = vsel %vm508, %v570, 2147483647
        %v587 = vand.u32 %v586, 65535
        %v588 = vshra.s32 %v586, 16
        %v589 = vcvt.s32.f32 %v587
        %v590 = vcvt.s32.f32 %v588
        %591 = vmin.xlane.f32.xlu0 %v590
        %v592 = vpop.xlane.xlu0 %591
        %vm593 = vcmp.eq.f32.partialorder %v590, %v592
        %v594 = vsel %vm593, %v589, inf
        %595 = vmin.xlane.f32.xlu0 %v594
        %v596 = vpop.xlane.xlu0 %595
        %v597 = vcvt.f32.s32 %v596
        %v598 = vcvt.f32.s32 %v592
        %v599 = vshll.u32 %v598, 16
        %v600 = vadd.s32 %v599, %v597
        %vm601 = vcmp.eq.s32.totalorder %v507, %v585
        %vm602 = vcmp.eq.s32.totalorder %v507, %v600
        %v603 = vsel %vm601, 1, 0
        %v604 = vsel %vm602, 1, 0
        %v605 = vcvt.s32.f32 %v603
        %v606 = vcvt.s32.f32 %v604
        %v607 = vadd.f32 %v555, %v605
        %v608 = vadd.f32 %v556, %v606
        %v609 = vadd.f32 %v607, %v608
        %v610 = vpack.c.bf16 %v609, %v609
        %v611 = vld [vmem:[%s4] sm:$0xf]
        %v612 = vld [vmem:[%s4 + $0x4] sm:$0xf]
        %v615 = vunpack.c.l.b16 %v611
        %v616 = vunpack.c.l.b16 %v612
        %v617 = vpack.c.b16 %v616, %v615
        %v620 = vsel %vm508, %v610, 0
        %622 = vmatprep.subr.bf16.mxu0 0
        %623 = vmatpush1.bf16.msra.mxu0 %v617
        %624 = vmatprep.subr.bf16.mxu0 0
        %625 = vmatpush1.bf16.msra.mxu0 0
        %626 = vmatprep.subr.bf16.mxu0 0
        %627 = vmatpush1.bf16.msra.mxu0 0
        %628 = vmatprep.subr.bf16.mxu0 0
        %629 = vmatpush1.bf16.msra.mxu0 0
        %630 = vmatprep.subr.bf16.mxu0 0
        %631 = vmatpush1.bf16.msra.mxu0 0
        %632 = vmatprep.subr.bf16.mxu0 0
        %633 = vmatpush1.bf16.msra.mxu0 0
        %634 = vmatprep.subr.bf16.mxu0 0
        %635 = vmatpush1.bf16.msra.mxu0 0
        %636 = vmatprep.subr.bf16.mxu0 0
        %637 = vmatpush1.bf16.msra.mxu0 0
        %638 = vmatprep.subr.bf16.mxu0 0
        %639 = vmatpush1.bf16.msra.mxu0 0
        %640 = vmatprep.subr.bf16.mxu0 0
        %641 = vmatpush1.bf16.msra.mxu0 0
        %642 = vmatprep.subr.bf16.mxu0 0
        %643 = vmatpush1.bf16.msra.mxu0 0
        %644 = vmatprep.subr.bf16.mxu0 0
        %645 = vmatpush1.bf16.msra.mxu0 0
        %646 = vmatprep.subr.bf16.mxu0 0
        %647 = vmatpush1.bf16.msra.mxu0 0
        %648 = vmatprep.subr.bf16.mxu0 0
        %649 = vmatpush1.bf16.msra.mxu0 0
        %650 = vmatprep.subr.bf16.mxu0 0
        %651 = vmatpush1.bf16.msra.mxu0 0
        %652 = vmatprep.subr.bf16.mxu0 0
        %653 = vmatpush1.bf16.msra.mxu0 0
        %654 = vmatprep.mubr.bf16.mxu0 0
        %655 = vmatmul.mubr.bf16.gmra.mrb[0].mxu0 %v620
        %v656 = vpop.f32.mrb[0].mxu0
        %v657 = vadd.f32 0.0, %v656
        %v658 = vpop.f32.mrb[0].mxu0
        %v659 = vpop.f32.mrb[0].mxu0
        %v660 = vpop.f32.mrb[0].mxu0
        %661 = vdwg.mxu0
        %v662 = vunpack.c.l.bf16 %v363
        %v663 = vmul.f32 %v662, %v657
        %v664 = vpack.c.bf16 %v663, %v663
        %665 = vst.msk [vmem:[%s361] sm:$0xf] %vm432, %v664
        %s666 = sand.u32 %s163, 1
        %s667 = scalar_lea.sflag [#allocation4], %s666
        %s668 = sand.u32 %s163, 1
        %s669 = smul.addr %s668, 4
        %s670 = scalar_lea.vmem [#allocation8], %s669
        %s671 = sand.u32 %s29, 1
        %s672 = scalar_lea.sflag [#allocation10], %s671
        %s673 = sand.u32 %s191, 1
        %s674 = smul.addr %s673, 4
        %s675 = scalar_lea.vmem [#allocation9], %s674
        %s676 = sand.u32 %s29, 1
        %s677 = scalar_lea.sflag [#allocation10], %s676
        %s678 = sand.u32 %s219, 1
        %s679 = smul.addr %s678, 4
        %s680 = scalar_lea.vmem [#allocation11], %s679
        // Predicated region
        $region53: #{tpu_custom_call.1} parent=39 // pred_check
          %p681 = pneg %p173
        $region54: #{tpu_custom_call.1} parent=39 // pred_check_branch
          %683 = sbr.rel (%p681) target = $region56
        $region55: #{tpu_custom_call.1} parent=39 // pred_region
          %s685 = ssub.s32 64, 64
          %686 = vsyncadd %s667, %s685
          %s687 = sadd.s32 %s34, %s33
          %s688 = smul.addr %s687, 64
          %s689 = scalar_lea.hbm %s5, %s688
          %s691 = sshll.u32 %s670, 4
          %s692 = int_to_ptr.vmem [resolvable:$true] %s691
          %694 = dma.vmem_to_hbm [thread:$0]  %s692, 64, %s689, %s667
        $region56: #{tpu_custom_call.1} parent=39 // pred_fallthru
          _
        // Predicated region
        $region57: #{tpu_custom_call.1} parent=39 // pred_check
          %p695 = pneg %p201
        $region58: #{tpu_custom_call.1} parent=39 // pred_check_branch
          %697 = sbr.rel (%p695) target = $region60
        $region59: #{tpu_custom_call.1} parent=39 // pred_region
          %s699 = ssub.s32 64, 64
          %700 = vsyncadd %s672, %s699
          %s701 = sadd.s32 %s34, %s33
          %s702 = smul.addr %s701, 64
          %s703 = scalar_lea.hbm %s6, %s702
          %s705 = sshll.u32 %s675, 4
          %s706 = int_to_ptr.vmem [resolvable:$true] %s705
          %708 = dma.vmem_to_hbm [thread:$0]  %s706, 64, %s703, %s672
        $region60: #{tpu_custom_call.1} parent=39 // pred_fallthru
          _
        // Predicated region
        $region61: #{tpu_custom_call.1} parent=39 // pred_check
          %p709 = pneg %p229
        $region62: #{tpu_custom_call.1} parent=39 // pred_check_branch
          %711 = sbr.rel (%p709) target = $region64
        $region63: #{tpu_custom_call.1} parent=39 // pred_region
          %s713 = ssub.s32 64, 64
          %714 = vsyncadd %s677, %s713
          %s715 = sadd.s32 %s34, %s33
          %s716 = smul.addr %s715, 64
          %s717 = scalar_lea.hbm %s7, %s716
          %s719 = sshll.u32 %s680, 4
          %s720 = int_to_ptr.vmem [resolvable:$true] %s719
          %722 = dma.vmem_to_hbm [thread:$0]  %s720, 64, %s717, %s677
        $region64: #{tpu_custom_call.1} parent=39 // pred_fallthru
          _
      $region40: #{tpu_custom_call.1} parent=5 // pred_fallthru
        _
      %p723 = scmp.le.s32.totalorder 2, %s24
      // Predicated region
      $region65: #{tpu_custom_call.1} parent=5 // pred_check
        %p724 = pneg %p723
      $region66: #{tpu_custom_call.1} parent=5 // pred_check_branch
        %726 = sbr.rel (%p724) target = $region68
      $region67: #{tpu_custom_call.1} parent=5 // pred_region
        %s727 = ssub.s32 %s24, 2
        // Predicated region
        $region69: #{tpu_custom_call.1} parent=67 // pred_check
          %p728 = pneg %p179
        $region70: #{tpu_custom_call.1} parent=67 // pred_check_branch
          %730 = sbr.rel (%p728) target = $region72
        $region71: #{tpu_custom_call.1} parent=67 // pred_region
          %s731 = sand.u32 %s164, 1
          %s732 = scalar_lea.sflag [#allocation4], %s731
          %s733 = sand.u32 %s164, 1
          %s734 = smul.addr %s733, 4
          %s735 = scalar_lea.vmem [#allocation8], %s734
          %736 = dma.done %s732, 64
        $region72: #{tpu_custom_call.1} parent=67 // pred_fallthru
          _
        // Predicated region
        $region73: #{tpu_custom_call.1} parent=67 // pred_check
          %p737 = pneg %p207
        $region74: #{tpu_custom_call.1} parent=67 // pred_check_branch
          %739 = sbr.rel (%p737) target = $region76
        $region75: #{tpu_custom_call.1} parent=67 // pred_region
          %s740 = sand.u32 %s30, 1
          %s741 = scalar_lea.sflag [#allocation10], %s740
          %s742 = sand.u32 %s192, 1
          %s743 = smul.addr %s742, 4
          %s744 = scalar_lea.vmem [#allocation9], %s743
          %745 = dma.done %s741, 64
        $region76: #{tpu_custom_call.1} parent=67 // pred_fallthru
          _
        // Predicated region
        $region77: #{tpu_custom_call.1} parent=67 // pred_check
          %p746 = pneg %p235
        $region78: #{tpu_custom_call.1} parent=67 // pred_check_branch
          %748 = sbr.rel (%p746) target = $region80
        $region79: #{tpu_custom_call.1} parent=67 // pred_region
          %s749 = sand.u32 %s30, 1
          %s750 = scalar_lea.sflag [#allocation10], %s749
          %s751 = sand.u32 %s220, 1
          %s752 = smul.addr %s751, 4
          %s753 = scalar_lea.vmem [#allocation11], %s752
          %754 = dma.done %s750, 64
        $region80: #{tpu_custom_call.1} parent=67 // pred_fallthru
          _
      $region68: #{tpu_custom_call.1} parent=5 // pred_fallthru
        _
    $region6: #{tpu_custom_call.1} parent=1 // loop_footer
      %s28 = sadd.s32 1, %s24
    $region7: #{tpu_custom_call.1} parent=1 // loop_footer_branch
      %23 = sbr.rel target = $region3
    $region8: #{tpu_custom_call.1} parent=1 // loop_exit
      _
    %755 = vsyncpa [#allocation3], 1
    %s756 = scalar_lea.sflag [#allocation3], 1
    %757 = vsyncpa %s756, 1
    %758 = vsyncpa [#allocation6], 1
    %759 = vsyncpa [#allocation4], 1
    %s760 = scalar_lea.sflag [#allocation4], 1
    %761 = vsyncpa %s760, 1
    %762 = vsyncpa [#allocation10], 1
    %s763 = scalar_lea.sflag [#allocation10], 1
    %764 = vsyncpa %s763, 1

</llo_original>
